<compile_context>
chip_gen: v5e
topology: v5e:2x2
jax: 0.10.0
libtpu: 0.0.40
codegen_flags: <defaults>
</compile_context>

<pallas_src>
import numpy as np
import jax
import jax.numpy as jnp
from jax import lax
from jax.experimental import pallas as pl
from jax.experimental.pallas import tpu as pltpu

# --------------------------- module "config" --------------------------------
DIM_IN = [4, 8]                     # channels per pathway
NUM_CLASSES = 8
POOL_SIZE = [[4, 1, 1], [8, 1, 1]]  # temporal pool kernel per pathway (== T)
RESOLUTION = [[4, 4], [4, 4]]       # ROIAlign output resolution per pathway
SCALE_FACTOR = [16, 16]             # spatial_scale = 1 / scale_factor
N, H, W = 2, 16, 16                 # batch, feature-map spatial size
M = 3                               # number of RoI boxes
# nn.Softmax(dim=4) is invalid for the 2-D (M, num_classes) output of this
# head; the detection configs use act_func='sigmoid', which we implement.
# TODO(synk): PGT caching branch (cfg.PGT.ENABLE) not implemented (config has it disabled).


# --------------------- host-side ROIAlign weight matrix ----------------------
def roi_align_weight_matrix(boxes, spatial_scale, pooled_h, pooled_w, height, width):
    """Dense interpolation matrix (M, pooled_h*pooled_w, height*width) matching
    torchvision roi_align(aligned=True, sampling_ratio=0) exactly."""
    m = boxes.shape[0]
    wmat = np.zeros((m, pooled_h * pooled_w, height * width), dtype=np.float64)
    offset = 0.5  # aligned=True
    for bi in range(m):
        x1, y1, x2, y2 = [float(v) for v in boxes[bi]]
        roi_start_w = x1 * spatial_scale - offset
        roi_start_h = y1 * spatial_scale - offset
        roi_end_w = x2 * spatial_scale - offset
        roi_end_h = y2 * spatial_scale - offset
        roi_w = roi_end_w - roi_start_w
        roi_h = roi_end_h - roi_start_h
        bin_h = roi_h / pooled_h
        bin_w = roi_w / pooled_w
        grid_h = max(int(np.ceil(roi_h / pooled_h)), 1)   # sampling_ratio == 0
        grid_w = max(int(np.ceil(roi_w / pooled_w)), 1)
        count = max(grid_h * grid_w, 1)
        for ph in range(pooled_h):
            for pw in range(pooled_w):
                bin_idx = ph * pooled_w + pw
                for iy in range(grid_h):
                    y = roi_start_h + ph * bin_h + (iy + 0.5) * bin_h / grid_h
                    for ix in range(grid_w):
                        x = roi_start_w + pw * bin_w + (ix + 0.5) * bin_w / grid_w
                        if y < -1.0 or y > height or x < -1.0 or x > width:
                            continue
                        yy = max(y, 0.0)
                        xx = max(x, 0.0)
                        y_low = int(yy)
                        x_low = int(xx)
                        if y_low >= height - 1:
                            y_low = y_high = height - 1
                            yy = float(y_low)
                        else:
                            y_high = y_low + 1
                        if x_low >= width - 1:
                            x_low = x_high = width - 1
                            xx = float(x_low)
                        else:
                            x_high = x_low + 1
                        ly, lx = yy - y_low, xx - x_low
                        hy, hx = 1.0 - ly, 1.0 - lx
                        wmat[bi, bin_idx, y_low * width + x_low] += hy * hx / count
                        wmat[bi, bin_idx, y_low * width + x_high] += hy * lx / count
                        wmat[bi, bin_idx, y_high * width + x_low] += ly * hx / count
                        wmat[bi, bin_idx, y_high * width + x_high] += ly * lx / count
    return wmat.astype(np.float32)


# ------------------------------ fused Pallas kernel ---------------------------
def _make_fused_head_kernel(num_pathways, num_boxes, rr_list, c_list):
    """Build the fused (tpool + ROIAlign + maxpool + linear + sigmoid) kernel.

    Kernel refs layout:
      [w_0, f_0, ..., w_{P-1}, f_{P-1}, pw_0, ..., pw_{P-1}, bias, out]
      w_p  : (M*RR_p, N*T_p*H*W)  folded (1/T avg + batch select + bilinear) weights
      f_p  : (C_p,    N*T_p*H*W)  channels-last feature slab
      pw_p : (C_p, K)             this pathway's slab of the Linear weight
      bias : (1, K)
      out  : (M, K)
    """
    def kernel(*refs):
        out_ref = refs[-1]
        bias_ref = refs[-2]
        logits = bias_ref[...]                                   # (1, K)
        for p in range(num_pathways):                            # unrolled at trace
            w_ref = refs[2 * p]
            f_ref = refs[2 * p + 1]
            pw_ref = refs[2 * num_pathways + p]
            # AvgPool3d + per-box batch selection + ROIAlign == ONE MXU matmul
            # contracting the flattened (batch, time, H, W) axis of both sides.
            roi = lax.dot_general(
                w_ref[...], f_ref[...],
                (((1,), (1,)), ((), ())),
                preferred_element_type=jnp.float32)              # (M*RR, C_p)
            # MaxPool2d(resolution): max over the RR bins of each box.
            pooled = jnp.max(
                roi.reshape(num_boxes, rr_list[p], c_list[p]), axis=1)  # (M, C_p)
            # Partial Linear projection for this pathway's channel slab.
            logits = logits + jnp.dot(pooled, pw_ref[...],
                                      preferred_element_type=jnp.float32)
        out_ref[...] = jax.nn.sigmoid(logits)                    # act_func='sigmoid'
    return kernel


# ------------------------------ head forward --------------------------------
def resnet_roi_head_forward(inputs, bboxes_np, proj_w, proj_b):
    """inputs: list of (N, C_p, T_p, H, W) float32 arrays; bboxes_np: (M, 5) numpy
    with [batch_idx, x1, y1, x2, y2] in input-image coordinates."""
    num_pathways = len(inputs)
    m = bboxes_np.shape[0]
    box_batch = bboxes_np[:, 0].astype(np.int64)
    n_batch = inputs[0].shape[0]
    # Validate batch indices on host (they index rows of the host-built matrix).
    assert np.all((box_batch >= 0) & (box_batch < n_batch)), "box batch index out of range"

    # Host side: spatial ROIAlign weights, computed ONCE per unique
    # (scale, resolution, H, W) and reused across pathways.
    spatial_cache = {}
    wbigs, rr_list, c_list = [], [], []
    for p, x in enumerate(inputs):
        n, c, t, h, w = x.shape
        key = (SCALE_FACTOR[p], RESOLUTION[p][0], RESOLUTION[p][1], h, w)
        if key not in spatial_cache:
            spatial_cache[key] = roi_align_weight_matrix(
                bboxes_np[:, 1:5], 1.0 / SCALE_FACTOR[p],
                RESOLUTION[p][0], RESOLUTION[p][1], h, w)        # (M, RR, H*W)
        wsp = spatial_cache[key]
        rr = wsp.shape[1]
        # Fold temporal average (1/T) and per-box batch selection into the matrix:
        # wbig[m*RR+rr, n*T*HW + t*HW + hw] = [n == batch(m)] * wsp[m, rr, hw] / T
        wbig = np.zeros((m, rr, n, t, h * w), dtype=np.float32)
        wbig[np.arange(m), :, box_batch, :, :] = wsp[:, :, None, :] / t
        wbigs.append(jnp.asarray(wbig.reshape(m * rr, n * t * h * w)))
        rr_list.append(rr)
        c_list.append(c)

    # Projection weight pre-split per pathway (matches concat order); bias (1, K).
    offs = np.cumsum([0] + c_list)
    pw_list = [jnp.asarray(proj_w[int(offs[p]):int(offs[p + 1]), :])
               for p in range(num_pathways)]
    bias2d = jnp.asarray(proj_b).reshape(1, -1)
    k = bias2d.shape[1]

    kernel = _make_fused_head_kernel(num_pathways, m, tuple(rr_list), tuple(c_list))
    n_in = 3 * num_pathways + 1

    def device_forward(xs, wbs, pws, b2d):
        args = []
        for x, wb in zip(xs, wbs):
            nn_, cc, tt, hh, ww = x.shape
            # channels-last, lane-dense feature slab: (C, N*T*H*W)
            feat = jnp.transpose(x, (1, 0, 2, 3, 4)).reshape(cc, nn_ * tt * hh * ww)
            args += [wb, feat]
        args += list(pws) + [b2d]
        return pl.pallas_call(
            kernel,
            out_shape=jax.ShapeDtypeStruct((m, k), jnp.float32),
            in_specs=[pl.BlockSpec(memory_space=pltpu.MemorySpace.VMEM)] * n_in,
            out_specs=pl.BlockSpec(memory_space=pltpu.MemorySpace.VMEM),
        )(*args)

    # dropout_rate == 0.0 -> no dropout; x.view(x.shape[0], -1) is the identity here.
    return jax.jit(device_forward)(tuple(inputs), tuple(wbigs), tuple(pw_list), bias2d)


# ------------------------------- reference ----------------------------------
def reference_forward(inputs, bboxes_np, proj_w, proj_b):
    box_batch = bboxes_np[:, 0].astype(np.int32)
    pool_out = []
    for p, x in enumerate(inputs):
        xn = np.asarray(x, dtype=np.float64)
        feat = xn.mean(axis=2).reshape(xn.shape[0], xn.shape[1], -1)  # (N,C,HW)
        rw = roi_align_weight_matrix(
            bboxes_np[:, 1:5], 1.0 / SCALE_FACTOR[p],
            RESOLUTION[p][0], RESOLUTION[p][1], H, W).astype(np.float64)
        sel = feat[box_batch]                                 # (M, C, HW)
        roi = np.einsum('mph,mch->mpc', rw, sel)              # (M, RR, C)
        pool_out.append(roi.max(axis=1))                      # (M, C)
    xcat = np.concatenate(pool_out, axis=1)
    logits = xcat @ np.asarray(proj_w, dtype=np.float64) + np.asarray(proj_b, np.float64)
    return 1.0 / (1.0 + np.exp(-logits))


# --------------------------------- main --------------------------------------
if __name__ == "__main__":
    key = jax.random.PRNGKey(0)
    k_in0, k_in1, k_box, k_w, k_b = jax.random.split(key, 5)

    # pathway inputs (N, C, T, H, W), PyTorch NCTHW convention
    x0 = jax.random.normal(k_in0, (N, DIM_IN[0], POOL_SIZE[0][0], H, W), jnp.float32)
    x1 = jax.random.normal(k_in1, (N, DIM_IN[1], POOL_SIZE[1][0], H, W), jnp.float32)
    inputs = [x0, x1]

    # boxes (M, 5): [batch_idx, x1, y1, x2, y2] in image coords (image = 16*16 = 256px)
    rb = np.asarray(jax.random.uniform(k_box, (M, 4), minval=0.0, maxval=1.0))
    img = H * SCALE_FACTOR[0]
    x1c = rb[:, 0] * (img - 80.0)
    y1c = rb[:, 1] * (img - 80.0)
    bw = 32.0 + rb[:, 2] * 48.0
    bh = 32.0 + rb[:, 3] * 48.0
    bboxes_np = np.stack(
        [np.array([0.0, 1.0, 0.0]), x1c, y1c, x1c + bw, y1c + bh], axis=1
    ).astype(np.float32)

    # Linear(sum(dim_in), num_classes) params, deterministic init (PyTorch-style bound)
    D = sum(DIM_IN)
    bound = 1.0 / np.sqrt(D)
    proj_w = jax.random.uniform(k_w, (D, NUM_CLASSES), jnp.float32, -bound, bound)
    proj_b = jax.random.uniform(k_b, (NUM_CLASSES,), jnp.float32, -bound, bound)

    out = resnet_roi_head_forward(inputs, bboxes_np, proj_w, proj_b)
    out = jax.block_until_ready(out)

    ref = reference_forward(inputs, bboxes_np, proj_w, proj_b)
    np.testing.assert_allclose(np.asarray(out), ref, rtol=1e-3, atol=1e-3)

    print("KERNEL_OK")
</pallas_src>

<mosaic_0001>
module attributes {stable_mosaic.version = 11 : i64} {
  func.func @kernel(%arg0: memref<48x2048xf32, #tpu.memory_space<vmem>>, %arg1: memref<4x2048xf32, #tpu.memory_space<vmem>>, %arg2: memref<48x4096xf32, #tpu.memory_space<vmem>>, %arg3: memref<8x4096xf32, #tpu.memory_space<vmem>>, %arg4: memref<4x8xf32, #tpu.memory_space<vmem>>, %arg5: memref<8x8xf32, #tpu.memory_space<vmem>>, %arg6: memref<1x8xf32, #tpu.memory_space<vmem>>, %arg7: memref<3x8xf32, #tpu.memory_space<vmem>>) attributes {dimension_semantics = [], scalar_prefetch = 0 : i64, scratch_operands = 0 : i64, tpu.core_type = #tpu.core_type<tc>} {
    %c0 = arith.constant 0 : index
    %c0_0 = arith.constant 0 : index
    %0 = vector.load %arg6[%c0, %c0_0] : memref<1x8xf32, #tpu.memory_space<vmem>>, vector<1x8xf32>
    %c0_1 = arith.constant 0 : index
    %c0_2 = arith.constant 0 : index
    %1 = vector.load %arg0[%c0_1, %c0_2] : memref<48x2048xf32, #tpu.memory_space<vmem>>, vector<48x2048xf32>
    %c0_3 = arith.constant 0 : index
    %c0_4 = arith.constant 0 : index
    %2 = vector.load %arg1[%c0_3, %c0_4] : memref<4x2048xf32, #tpu.memory_space<vmem>>, vector<4x2048xf32>
    %cst = arith.constant dense<0.000000e+00> : vector<48x4xf32>
    %3 = tpu.matmul %1, %2, %cst {dimension_numbers = #tpu.dot_dimension_numbers<[1], [1], [0], [0], [0, 0, 1, 0], [], []>} : vector<48x2048xf32>, vector<4x2048xf32>, vector<48x4xf32> -> vector<48x4xf32>
    %4 = vector.shape_cast %3 : vector<48x4xf32> to vector<3x16x4xf32>
    %cst_5 = arith.constant dense<0xFF800000> : vector<3x4xf32>
    %5 = vector.multi_reduction <maximumf>, %4, %cst_5 [1] : vector<3x16x4xf32> to vector<3x4xf32>
    %c0_6 = arith.constant 0 : index
    %c0_7 = arith.constant 0 : index
    %6 = vector.load %arg4[%c0_6, %c0_7] : memref<4x8xf32, #tpu.memory_space<vmem>>, vector<4x8xf32>
    %cst_8 = arith.constant dense<0.000000e+00> : vector<3x8xf32>
    %7 = tpu.matmul %5, %6, %cst_8 {dimension_numbers = #tpu.dot_dimension_numbers<[1], [0], [0], [1], [0, 0, 1, 1], [], []>} : vector<3x4xf32>, vector<4x8xf32>, vector<3x8xf32> -> vector<3x8xf32>
    %8 = vector.broadcast %0 : vector<1x8xf32> to vector<3x8xf32>
    %9 = arith.addf %8, %7 : vector<3x8xf32>
    %c0_9 = arith.constant 0 : index
    %c0_10 = arith.constant 0 : index
    %10 = vector.load %arg2[%c0_9, %c0_10] : memref<48x4096xf32, #tpu.memory_space<vmem>>, vector<48x4096xf32>
    %c0_11 = arith.constant 0 : index
    %c0_12 = arith.constant 0 : index
    %11 = vector.load %arg3[%c0_11, %c0_12] : memref<8x4096xf32, #tpu.memory_space<vmem>>, vector<8x4096xf32>
    %cst_13 = arith.constant dense<0.000000e+00> : vector<48x8xf32>
    %12 = tpu.matmul %10, %11, %cst_13 {dimension_numbers = #tpu.dot_dimension_numbers<[1], [1], [0], [0], [0, 0, 1, 0], [], []>} : vector<48x4096xf32>, vector<8x4096xf32>, vector<48x8xf32> -> vector<48x8xf32>
    %13 = vector.shape_cast %12 : vector<48x8xf32> to vector<3x16x8xf32>
    %cst_14 = arith.constant dense<0xFF800000> : vector<3x8xf32>
    %14 = vector.multi_reduction <maximumf>, %13, %cst_14 [1] : vector<3x16x8xf32> to vector<3x8xf32>
    %c0_15 = arith.constant 0 : index
    %c0_16 = arith.constant 0 : index
    %15 = vector.load %arg5[%c0_15, %c0_16] : memref<8x8xf32, #tpu.memory_space<vmem>>, vector<8x8xf32>
    %cst_17 = arith.constant dense<0.000000e+00> : vector<3x8xf32>
    %16 = tpu.matmul %14, %15, %cst_17 {dimension_numbers = #tpu.dot_dimension_numbers<[1], [0], [0], [1], [0, 0, 1, 1], [], []>} : vector<3x8xf32>, vector<8x8xf32>, vector<3x8xf32> -> vector<3x8xf32>
    %17 = arith.addf %9, %16 : vector<3x8xf32>
    %18 = arith.negf %17 : vector<3x8xf32>
    %19 = math.exp %18 : vector<3x8xf32>
    %cst_18 = arith.constant 1.000000e+00 : f32
    %20 = vector.broadcast %cst_18 : f32 to vector<3x8xf32>
    %21 = arith.addf %20, %19 : vector<3x8xf32>
    %22 = arith.divf %20, %21 : vector<3x8xf32>
    %c0_19 = arith.constant 0 : index
    %c0_20 = arith.constant 0 : index
    %23 = vector.load %arg7[%c0_19, %c0_20] : memref<3x8xf32, #tpu.memory_space<vmem>>, vector<3x8xf32>
    tpu.vector_store %arg7[%c0_19, %c0_20], %22 {strides = array<i32>} : memref<3x8xf32, #tpu.memory_space<vmem>>, vector<3x8xf32>,
    return
  }
}

</mosaic_0001>

<llo_original>
// kernel: device_forward.1
$region0: #{device_forward.1}
  #allocation0 [shape = 'u32[]', space=smem, size = 0x4, offset = 0x4, fixed_abs, tag = 'smem constant byte address 0x4 - core index']
  #allocation1 [shape = 'u32[72,128]{1,0:T(1,128)}', space=vmem, size = 0x9000, scoped, tag = 'internal scratch']
  %s0 = inlined_call_operand.vmem [shape: f32[48,2048], index: 0, kind: input, shape index: {}]
  %s1 = inlined_call_operand.vmem [shape: f32[4,2048], index: 1, kind: input, shape index: {}]
  %s2 = inlined_call_operand.vmem [shape: f32[48,4096], index: 2, kind: input, shape index: {}]
  %s3 = inlined_call_operand.vmem [shape: f32[8,4096], index: 3, kind: input, shape index: {}]
  %s4 = inlined_call_operand.vmem [shape: f32[4,8], index: 4, kind: input, shape index: {}]
  %s5 = inlined_call_operand.vmem [shape: f32[8,8], index: 5, kind: input, shape index: {}]
  %s6 = inlined_call_operand.vmem [shape: f32[1,8], index: 6, kind: input, shape index: {}]
  %s7 = inlined_call_operand.hbm [shape: f32[3,8], index: 7, kind: output, shape index: {}]
  %s8 = sld [smem:[#allocation0]]
  $region38: #{device_forward.1} parent=0
    _
  %s10 = ssub.s32 1, %s8
  %s11 = scalar_select 0, %s10, %s8
  $region1: #{device_forward.1} parent=0
    #allocation2 [shape = 'u8[2048]{0}', space=vmem, size = 0x800, scoped, tag = 'output window, operand 0, single buffered']
    #allocation3 [shape = 's32[1]{0}', space=sflag, size = 0x4, scoped, tag = 'scoped memory for device_forward.1']
    %12 = vsyncpa [#allocation3], 0
    // Predicated region
    $region2: #{device_forward.1} parent=1 // pred_check
      _
    $region3: #{device_forward.1} parent=1 // pred_check_branch
      %14 = sbr.rel (0) target = $region5
    $region4: #{device_forward.1} parent=1 // pred_region
      _
    $region5: #{device_forward.1} parent=1 // pred_fallthru
      _
    // Predicated region
    $region6: #{device_forward.1} parent=1 // pred_check
      _
    $region7: #{device_forward.1} parent=1 // pred_check_branch
      %16 = sbr.rel (0) target = $region9
    $region8: #{device_forward.1} parent=1 // pred_region
      _
    $region9: #{device_forward.1} parent=1 // pred_fallthru
      _
    // Predicated region
    $region10: #{device_forward.1} parent=1 // pred_check
      _
    $region11: #{device_forward.1} parent=1 // pred_check_branch
      %18 = sbr.rel (0) target = $region13
    $region12: #{device_forward.1} parent=1 // pred_region
      _
    $region13: #{device_forward.1} parent=1 // pred_fallthru
      _
    // Predicated region
    $region14: #{device_forward.1} parent=1 // pred_check
      _
    $region15: #{device_forward.1} parent=1 // pred_check_branch
      %20 = sbr.rel (0) target = $region17
    $region16: #{device_forward.1} parent=1 // pred_region
      _
    $region17: #{device_forward.1} parent=1 // pred_fallthru
      _
    // Predicated region
    $region18: #{device_forward.1} parent=1 // pred_check
      _
    $region19: #{device_forward.1} parent=1 // pred_check_branch
      %22 = sbr.rel (0) target = $region21
    $region20: #{device_forward.1} parent=1 // pred_region
      _
    $region21: #{device_forward.1} parent=1 // pred_fallthru
      _
    // Predicated region
    $region22: #{device_forward.1} parent=1 // pred_check
      _
    $region23: #{device_forward.1} parent=1 // pred_check_branch
      %24 = sbr.rel (0) target = $region25
    $region24: #{device_forward.1} parent=1 // pred_region
      _
    $region25: #{device_forward.1} parent=1 // pred_fallthru
      _
    // Predicated region
    $region26: #{device_forward.1} parent=1 // pred_check
      _
    $region27: #{device_forward.1} parent=1 // pred_check_branch
      %26 = sbr.rel (0) target = $region29
    $region28: #{device_forward.1} parent=1 // pred_region
      _
    $region29: #{device_forward.1} parent=1 // pred_fallthru
      _
    %v27 = vld [vmem:[%s6] sm:$0x1]
    %v28 = vld [vmem:[%s0] sm:$0xff]
    %v29 = vld [vmem:[%s0 + $0x8] sm:$0xff]
    %v30 = vld [vmem:[%s0 + $0x10] sm:$0xff]
    %v31 = vld [vmem:[%s0 + $0x18] sm:$0xff]
    %v32 = vld [vmem:[%s0 + $0x20] sm:$0xff]
    %v33 = vld [vmem:[%s0 + $0x28] sm:$0xff]
    %v34 = vld [vmem:[%s0 + $0x30] sm:$0xff]
    %v35 = vld [vmem:[%s0 + $0x38] sm:$0xff]
    %v36 = vld [vmem:[%s0 + $0x40] sm:$0xff]
    %v37 = vld [vmem:[%s0 + $0x48] sm:$0xff]
    %v38 = vld [vmem:[%s0 + $0x50] sm:$0xff]
    %v39 = vld [vmem:[%s0 + $0x58] sm:$0xff]
    %v40 = vld [vmem:[%s0 + $0x60] sm:$0xff]
    %v41 = vld [vmem:[%s0 + $0x68] sm:$0xff]
    %v42 = vld [vmem:[%s0 + $0x70] sm:$0xff]
    %v43 = vld [vmem:[%s0 + $0x78] sm:$0xff]
    %v44 = vld [vmem:[%s0 + $0x80] sm:$0xff]
    %v45 = vld [vmem:[%s0 + $0x88] sm:$0xff]
    %v46 = vld [vmem:[%s0 + $0x90] sm:$0xff]
    %v47 = vld [vmem:[%s0 + $0x98] sm:$0xff]
    %v48 = vld [vmem:[%s0 + $0xa0] sm:$0xff]
    %v49 = vld [vmem:[%s0 + $0xa8] sm:$0xff]
    %v50 = vld [vmem:[%s0 + $0xb0] sm:$0xff]
    %v51 = vld [vmem:[%s0 + $0xb8] sm:$0xff]
    %v52 = vld [vmem:[%s0 + $0xc0] sm:$0xff]
    %v53 = vld [vmem:[%s0 + $0xc8] sm:$0xff]
    %v54 = vld [vmem:[%s0 + $0xd0] sm:$0xff]
    %v55 = vld [vmem:[%s0 + $0xd8] sm:$0xff]
    %v56 = vld [vmem:[%s0 + $0xe0] sm:$0xff]
    %v57 = vld [vmem:[%s0 + $0xe8] sm:$0xff]
    %v58 = vld [vmem:[%s0 + $0xf0] sm:$0xff]
    %v59 = vld [vmem:[%s0 + $0xf8] sm:$0xff]
    %v60 = vld [vmem:[%s0 + $0x100] sm:$0xff]
    %v61 = vld [vmem:[%s0 + $0x108] sm:$0xff]
    %v62 = vld [vmem:[%s0 + $0x110] sm:$0xff]
    %v63 = vld [vmem:[%s0 + $0x118] sm:$0xff]
    %v64 = vld [vmem:[%s0 + $0x120] sm:$0xff]
    %v65 = vld [vmem:[%s0 + $0x128] sm:$0xff]
    %v66 = vld [vmem:[%s0 + $0x130] sm:$0xff]
    %v67 = vld [vmem:[%s0 + $0x138] sm:$0xff]
    %v68 = vld [vmem:[%s0 + $0x140] sm:$0xff]
    %v69 = vld [vmem:[%s0 + $0x148] sm:$0xff]
    %v70 = vld [vmem:[%s0 + $0x150] sm:$0xff]
    %v71 = vld [vmem:[%s0 + $0x158] sm:$0xff]
    %v72 = vld [vmem:[%s0 + $0x160] sm:$0xff]
    %v73 = vld [vmem:[%s0 + $0x168] sm:$0xff]
    %v74 = vld [vmem:[%s0 + $0x170] sm:$0xff]
    %v75 = vld [vmem:[%s0 + $0x178] sm:$0xff]
    %v76 = vld [vmem:[%s0 + $0x180] sm:$0xff]
    %v77 = vld [vmem:[%s0 + $0x188] sm:$0xff]
    %v78 = vld [vmem:[%s0 + $0x190] sm:$0xff]
    %v79 = vld [vmem:[%s0 + $0x198] sm:$0xff]
    %v80 = vld [vmem:[%s0 + $0x1a0] sm:$0xff]
    %v81 = vld [vmem:[%s0 + $0x1a8] sm:$0xff]
    %v82 = vld [vmem:[%s0 + $0x1b0] sm:$0xff]
    %v83 = vld [vmem:[%s0 + $0x1b8] sm:$0xff]
    %v84 = vld [vmem:[%s0 + $0x1c0] sm:$0xff]
    %v85 = vld [vmem:[%s0 + $0x1c8] sm:$0xff]
    %v86 = vld [vmem:[%s0 + $0x1d0] sm:$0xff]
    %v87 = vld [vmem:[%s0 + $0x1d8] sm:$0xff]
    %v88 = vld [vmem:[%s0 + $0x1e0] sm:$0xff]
    %v89 = vld [vmem:[%s0 + $0x1e8] sm:$0xff]
    %v90 = vld [vmem:[%s0 + $0x1f0] sm:$0xff]
    %v91 = vld [vmem:[%s0 + $0x1f8] sm:$0xff]
    %v92 = vld [vmem:[%s0 + $0x200] sm:$0xff]
    %v93 = vld [vmem:[%s0 + $0x208] sm:$0xff]
    %v94 = vld [vmem:[%s0 + $0x210] sm:$0xff]
    %v95 = vld [vmem:[%s0 + $0x218] sm:$0xff]
    %v96 = vld [vmem:[%s0 + $0x220] sm:$0xff]
    %v97 = vld [vmem:[%s0 + $0x228] sm:$0xff]
    %v98 = vld [vmem:[%s0 + $0x230] sm:$0xff]
    %v99 = vld [vmem:[%s0 + $0x238] sm:$0xff]
    %v100 = vld [vmem:[%s0 + $0x240] sm:$0xff]
    %v101 = vld [vmem:[%s0 + $0x248] sm:$0xff]
    %v102 = vld [vmem:[%s0 + $0x250] sm:$0xff]
    %v103 = vld [vmem:[%s0 + $0x258] sm:$0xff]
    %v104 = vld [vmem:[%s0 + $0x260] sm:$0xff]
    %v105 = vld [vmem:[%s0 + $0x268] sm:$0xff]
    %v106 = vld [vmem:[%s0 + $0x270] sm:$0xff]
    %v107 = vld [vmem:[%s0 + $0x278] sm:$0xff]
    %v108 = vld [vmem:[%s0 + $0x280] sm:$0xff]
    %v109 = vld [vmem:[%s0 + $0x288] sm:$0xff]
    %v110 = vld [vmem:[%s0 + $0x290] sm:$0xff]
    %v111 = vld [vmem:[%s0 + $0x298] sm:$0xff]
    %v112 = vld [vmem:[%s0 + $0x2a0] sm:$0xff]
    %v113 = vld [vmem:[%s0 + $0x2a8] sm:$0xff]
    %v114 = vld [vmem:[%s0 + $0x2b0] sm:$0xff]
    %v115 = vld [vmem:[%s0 + $0x2b8] sm:$0xff]
    %v116 = vld [vmem:[%s0 + $0x2c0] sm:$0xff]
    %v117 = vld [vmem:[%s0 + $0x2c8] sm:$0xff]
    %v118 = vld [vmem:[%s0 + $0x2d0] sm:$0xff]
    %v119 = vld [vmem:[%s0 + $0x2d8] sm:$0xff]
    %v120 = vld [vmem:[%s0 + $0x2e0] sm:$0xff]
    %v121 = vld [vmem:[%s0 + $0x2e8] sm:$0xff]
    %v122 = vld [vmem:[%s0 + $0x2f0] sm:$0xff]
    %v123 = vld [vmem:[%s0 + $0x2f8] sm:$0xff]
    %v124 = vld [vmem:[%s1] sm:$0xff]
    %v125 = vld [vmem:[%s1 + $0x8] sm:$0xff]
    %v126 = vld [vmem:[%s1 + $0x10] sm:$0xff]
    %v127 = vld [vmem:[%s1 + $0x18] sm:$0xff]
    %v128 = vld [vmem:[%s1 + $0x20] sm:$0xff]
    %v129 = vld [vmem:[%s1 + $0x28] sm:$0xff]
    %v130 = vld [vmem:[%s1 + $0x30] sm:$0xff]
    %v131 = vld [vmem:[%s1 + $0x38] sm:$0xff]
    %140 = vst [vmem:[#allocation1] ss:$2 sm:$0xff] %v124
    %s141 = scalar_lea.vmem [#allocation1], 16
    %142 = vst [vmem:[%s141] ss:$2 sm:$0xff] %v125
    %s143 = scalar_lea.vmem [#allocation1], 32
    %144 = vst [vmem:[%s143] ss:$2 sm:$0xff] %v126
    %s145 = scalar_lea.vmem [#allocation1], 48
    %146 = vst [vmem:[%s145] ss:$2 sm:$0xff] %v127
    %v147 = vld.sshfl [vmem:[#allocation1] sm:$0xff pattern:$0x75316420]
    %v148 = vld.sshfl [vmem:[#allocation1 + $0x8] sm:$0xff pattern:$0x75316420]
    %v149 = vld.sshfl [vmem:[#allocation1 + $0x10] sm:$0xff pattern:$0x75316420]
    %v150 = vld.sshfl [vmem:[#allocation1 + $0x18] sm:$0xff pattern:$0x75316420]
    %v151 = vld.sshfl [vmem:[#allocation1 + $0x20] sm:$0xff pattern:$0x75316420]
    %v152 = vld.sshfl [vmem:[#allocation1 + $0x28] sm:$0xff pattern:$0x75316420]
    %v153 = vld.sshfl [vmem:[#allocation1 + $0x30] sm:$0xff pattern:$0x75316420]
    %v154 = vld.sshfl [vmem:[#allocation1 + $0x38] sm:$0xff pattern:$0x75316420]
    %155 = vst [vmem:[#allocation1] ss:$2 sm:$0xff] %v128
    %156 = vst [vmem:[%s141] ss:$2 sm:$0xff] %v129
    %157 = vst [vmem:[%s143] ss:$2 sm:$0xff] %v130
    %158 = vst [vmem:[%s145] ss:$2 sm:$0xff] %v131
    %v159 = vld.sshfl [vmem:[#allocation1] sm:$0xff pattern:$0x75316420]
    %v160 = vld.sshfl [vmem:[#allocation1 + $0x8] sm:$0xff pattern:$0x75316420]
    %v161 = vld.sshfl [vmem:[#allocation1 + $0x10] sm:$0xff pattern:$0x75316420]
    %v162 = vld.sshfl [vmem:[#allocation1 + $0x18] sm:$0xff pattern:$0x75316420]
    %v163 = vld.sshfl [vmem:[#allocation1 + $0x20] sm:$0xff pattern:$0x75316420]
    %v164 = vld.sshfl [vmem:[#allocation1 + $0x28] sm:$0xff pattern:$0x75316420]
    %v165 = vld.sshfl [vmem:[#allocation1 + $0x30] sm:$0xff pattern:$0x75316420]
    %v166 = vld.sshfl [vmem:[#allocation1 + $0x38] sm:$0xff pattern:$0x75316420]
    %183 = vmatpush.xpose.msra.mxu0 0.0
    %184 = vmatpush.xpose.msra.mxu0 0.0
    %185 = vmatpush.xpose.msra.mxu0 0.0
    %186 = vmatpush.xpose.msra.mxu0 0.0
    %187 = vmatpush.xpose.msra.mxu0 0.0
    %188 = vmatpush.xpose.msra.mxu0 0.0
    %189 = vmatpush.xpose.msra.mxu0 0.0
    %190 = vmatpush.xpose.msra.mxu0 0.0
    %191 = vmatpush.xpose.msra.mxu0 0.0
    %192 = vmatpush.xpose.msra.mxu0 0.0
    %193 = vmatpush.xpose.msra.mxu0 0.0
    %194 = vmatpush.xpose.msra.mxu0 0.0
    %195 = vmatpush.xpose.msra.mxu0 0.0
    %196 = vmatpush.xpose.msra.mxu0 0.0
    %197 = vmatpush.xpose.msra.mxu0 0.0
    %198 = vmatpush.xpose.msra.mxu0 %v147
    %199 = vmatmul.f32.gmra.mxu0 %v28
    %v200 = vpop.f32.mrf.mxu0
    %v201 = vadd.f32 0.0, %v200
    %202 = vmatmul.f32.gmra.mxu0 %v44
    %v203 = vpop.f32.mrf.mxu0
    %v204 = vadd.f32 0.0, %v203
    %205 = vmatmul.f32.gmra.mxu0 %v60
    %v206 = vpop.f32.mrf.mxu0
    %v207 = vadd.f32 0.0, %v206
    %208 = vmatmul.f32.gmra.mxu0 %v76
    %v209 = vpop.f32.mrf.mxu0
    %v210 = vadd.f32 0.0, %v209
    %211 = vmatmul.f32.gmra.mxu0 %v92
    %v212 = vpop.f32.mrf.mxu0
    %v213 = vadd.f32 0.0, %v212
    %214 = vmatmul.f32.gmra.mxu0 %v108
    %v215 = vpop.f32.mrf.mxu0
    %v216 = vadd.f32 0.0, %v215
    %217 = vdwg.mxu0
    %218 = vmatpush.xpose.msra.mxu0 0.0
    %219 = vmatpush.xpose.msra.mxu0 0.0
    %220 = vmatpush.xpose.msra.mxu0 0.0
    %221 = vmatpush.xpose.msra.mxu0 0.0
    %222 = vmatpush.xpose.msra.mxu0 0.0
    %223 = vmatpush.xpose.msra.mxu0 0.0
    %224 = vmatpush.xpose.msra.mxu0 0.0
    %225 = vmatpush.xpose.msra.mxu0 0.0
    %226 = vmatpush.xpose.msra.mxu0 0.0
    %227 = vmatpush.xpose.msra.mxu0 0.0
    %228 = vmatpush.xpose.msra.mxu0 0.0
    %229 = vmatpush.xpose.msra.mxu0 0.0
    %230 = vmatpush.xpose.msra.mxu0 0.0
    %231 = vmatpush.xpose.msra.mxu0 0.0
    %232 = vmatpush.xpose.msra.mxu0 0.0
    %233 = vmatpush.xpose.msra.mxu0 %v148
    %234 = vmatmul.f32.gmra.mxu0 %v29
    %v235 = vpop.f32.mrf.mxu0
    %v236 = vadd.f32 %v201, %v235
    %237 = vmatmul.f32.gmra.mxu0 %v45
    %v238 = vpop.f32.mrf.mxu0
    %v239 = vadd.f32 %v204, %v238
    %240 = vmatmul.f32.gmra.mxu0 %v61
    %v241 = vpop.f32.mrf.mxu0
    %v242 = vadd.f32 %v207, %v241
    %243 = vmatmul.f32.gmra.mxu0 %v77
    %v244 = vpop.f32.mrf.mxu0
    %v245 = vadd.f32 %v210, %v244
    %246 = vmatmul.f32.gmra.mxu0 %v93
    %v247 = vpop.f32.mrf.mxu0
    %v248 = vadd.f32 %v213, %v247
    %249 = vmatmul.f32.gmra.mxu0 %v109
    %v250 = vpop.f32.mrf.mxu0
    %v251 = vadd.f32 %v216, %v250
    %252 = vdwg.mxu0
    %253 = vmatpush.xpose.msra.mxu0 0.0
    %254 = vmatpush.xpose.msra.mxu0 0.0
    %255 = vmatpush.xpose.msra.mxu0 0.0
    %256 = vmatpush.xpose.msra.mxu0 0.0
    %257 = vmatpush.xpose.msra.mxu0 0.0
    %258 = vmatpush.xpose.msra.mxu0 0.0
    %259 = vmatpush.xpose.msra.mxu0 0.0
    %260 = vmatpush.xpose.msra.mxu0 0.0
    %261 = vmatpush.xpose.msra.mxu0 0.0
    %262 = vmatpush.xpose.msra.mxu0 0.0
    %263 = vmatpush.xpose.msra.mxu0 0.0
    %264 = vmatpush.xpose.msra.mxu0 0.0
    %265 = vmatpush.xpose.msra.mxu0 0.0
    %266 = vmatpush.xpose.msra.mxu0 0.0
    %267 = vmatpush.xpose.msra.mxu0 0.0
    %268 = vmatpush.xpose.msra.mxu0 %v149
    %269 = vmatmul.f32.gmra.mxu0 %v30
    %v270 = vpop.f32.mrf.mxu0
    %v271 = vadd.f32 %v236, %v270
    %272 = vmatmul.f32.gmra.mxu0 %v46
    %v273 = vpop.f32.mrf.mxu0
    %v274 = vadd.f32 %v239, %v273
    %275 = vmatmul.f32.gmra.mxu0 %v62
    %v276 = vpop.f32.mrf.mxu0
    %v277 = vadd.f32 %v242, %v276
    %278 = vmatmul.f32.gmra.mxu0 %v78
    %v279 = vpop.f32.mrf.mxu0
    %v280 = vadd.f32 %v245, %v279
    %281 = vmatmul.f32.gmra.mxu0 %v94
    %v282 = vpop.f32.mrf.mxu0
    %v283 = vadd.f32 %v248, %v282
    %284 = vmatmul.f32.gmra.mxu0 %v110
    %v285 = vpop.f32.mrf.mxu0
    %v286 = vadd.f32 %v251, %v285
    %287 = vdwg.mxu0
    %288 = vmatpush.xpose.msra.mxu0 0.0
    %289 = vmatpush.xpose.msra.mxu0 0.0
    %290 = vmatpush.xpose.msra.mxu0 0.0
    %291 = vmatpush.xpose.msra.mxu0 0.0
    %292 = vmatpush.xpose.msra.mxu0 0.0
    %293 = vmatpush.xpose.msra.mxu0 0.0
    %294 = vmatpush.xpose.msra.mxu0 0.0
    %295 = vmatpush.xpose.msra.mxu0 0.0
    %296 = vmatpush.xpose.msra.mxu0 0.0
    %297 = vmatpush.xpose.msra.mxu0 0.0
    %298 = vmatpush.xpose.msra.mxu0 0.0
    %299 = vmatpush.xpose.msra.mxu0 0.0
    %300 = vmatpush.xpose.msra.mxu0 0.0
    %301 = vmatpush.xpose.msra.mxu0 0.0
    %302 = vmatpush.xpose.msra.mxu0 0.0
    %303 = vmatpush.xpose.msra.mxu0 %v150
    %304 = vmatmul.f32.gmra.mxu0 %v31
    %v305 = vpop.f32.mrf.mxu0
    %v306 = vadd.f32 %v271, %v305
    %307 = vmatmul.f32.gmra.mxu0 %v47
    %v308 = vpop.f32.mrf.mxu0
    %v309 = vadd.f32 %v274, %v308
    %310 = vmatmul.f32.gmra.mxu0 %v63
    %v311 = vpop.f32.mrf.mxu0
    %v312 = vadd.f32 %v277, %v311
    %313 = vmatmul.f32.gmra.mxu0 %v79
    %v314 = vpop.f32.mrf.mxu0
    %v315 = vadd.f32 %v280, %v314
    %316 = vmatmul.f32.gmra.mxu0 %v95
    %v317 = vpop.f32.mrf.mxu0
    %v318 = vadd.f32 %v283, %v317
    %319 = vmatmul.f32.gmra.mxu0 %v111
    %v320 = vpop.f32.mrf.mxu0
    %v321 = vadd.f32 %v286, %v320
    %322 = vdwg.mxu0
    %323 = vmatpush.xpose.msra.mxu0 0.0
    %324 = vmatpush.xpose.msra.mxu0 0.0
    %325 = vmatpush.xpose.msra.mxu0 0.0
    %326 = vmatpush.xpose.msra.mxu0 0.0
    %327 = vmatpush.xpose.msra.mxu0 0.0
    %328 = vmatpush.xpose.msra.mxu0 0.0
    %329 = vmatpush.xpose.msra.mxu0 0.0
    %330 = vmatpush.xpose.msra.mxu0 0.0
    %331 = vmatpush.xpose.msra.mxu0 0.0
    %332 = vmatpush.xpose.msra.mxu0 0.0
    %333 = vmatpush.xpose.msra.mxu0 0.0
    %334 = vmatpush.xpose.msra.mxu0 0.0
    %335 = vmatpush.xpose.msra.mxu0 0.0
    %336 = vmatpush.xpose.msra.mxu0 0.0
    %337 = vmatpush.xpose.msra.mxu0 0.0
    %338 = vmatpush.xpose.msra.mxu0 %v151
    %339 = vmatmul.f32.gmra.mxu0 %v32
    %v340 = vpop.f32.mrf.mxu0
    %v341 = vadd.f32 %v306, %v340
    %342 = vmatmul.f32.gmra.mxu0 %v48
    %v343 = vpop.f32.mrf.mxu0
    %v344 = vadd.f32 %v309, %v343
    %345 = vmatmul.f32.gmra.mxu0 %v64
    %v346 = vpop.f32.mrf.mxu0
    %v347 = vadd.f32 %v312, %v346
    %348 = vmatmul.f32.gmra.mxu0 %v80
    %v349 = vpop.f32.mrf.mxu0
    %v350 = vadd.f32 %v315, %v349
    %351 = vmatmul.f32.gmra.mxu0 %v96
    %v352 = vpop.f32.mrf.mxu0
    %v353 = vadd.f32 %v318, %v352
    %354 = vmatmul.f32.gmra.mxu0 %v112
    %v355 = vpop.f32.mrf.mxu0
    %v356 = vadd.f32 %v321, %v355
    %357 = vdwg.mxu0
    %358 = vmatpush.xpose.msra.mxu0 0.0
    %359 = vmatpush.xpose.msra.mxu0 0.0
    %360 = vmatpush.xpose.msra.mxu0 0.0
    %361 = vmatpush.xpose.msra.mxu0 0.0
    %362 = vmatpush.xpose.msra.mxu0 0.0
    %363 = vmatpush.xpose.msra.mxu0 0.0
    %364 = vmatpush.xpose.msra.mxu0 0.0
    %365 = vmatpush.xpose.msra.mxu0 0.0
    %366 = vmatpush.xpose.msra.mxu0 0.0
    %367 = vmatpush.xpose.msra.mxu0 0.0
    %368 = vmatpush.xpose.msra.mxu0 0.0
    %369 = vmatpush.xpose.msra.mxu0 0.0
    %370 = vmatpush.xpose.msra.mxu0 0.0
    %371 = vmatpush.xpose.msra.mxu0 0.0
    %372 = vmatpush.xpose.msra.mxu0 0.0
    %373 = vmatpush.xpose.msra.mxu0 %v152
    %374 = vmatmul.f32.gmra.mxu0 %v33
    %v375 = vpop.f32.mrf.mxu0
    %v376 = vadd.f32 %v341, %v375
    %377 = vmatmul.f32.gmra.mxu0 %v49
    %v378 = vpop.f32.mrf.mxu0
    %v379 = vadd.f32 %v344, %v378
    %380 = vmatmul.f32.gmra.mxu0 %v65
    %v381 = vpop.f32.mrf.mxu0
    %v382 = vadd.f32 %v347, %v381
    %383 = vmatmul.f32.gmra.mxu0 %v81
    %v384 = vpop.f32.mrf.mxu0
    %v385 = vadd.f32 %v350, %v384
    %386 = vmatmul.f32.gmra.mxu0 %v97
    %v387 = vpop.f32.mrf.mxu0
    %v388 = vadd.f32 %v353, %v387
    %389 = vmatmul.f32.gmra.mxu0 %v113
    %v390 = vpop.f32.mrf.mxu0
    %v391 = vadd.f32 %v356, %v390
    %392 = vdwg.mxu0
    %393 = vmatpush.xpose.msra.mxu0 0.0
    %394 = vmatpush.xpose.msra.mxu0 0.0
    %395 = vmatpush.xpose.msra.mxu0 0.0
    %396 = vmatpush.xpose.msra.mxu0 0.0
    %397 = vmatpush.xpose.msra.mxu0 0.0
    %398 = vmatpush.xpose.msra.mxu0 0.0
    %399 = vmatpush.xpose.msra.mxu0 0.0
    %400 = vmatpush.xpose.msra.mxu0 0.0
    %401 = vmatpush.xpose.msra.mxu0 0.0
    %402 = vmatpush.xpose.msra.mxu0 0.0
    %403 = vmatpush.xpose.msra.mxu0 0.0
    %404 = vmatpush.xpose.msra.mxu0 0.0
    %405 = vmatpush.xpose.msra.mxu0 0.0
    %406 = vmatpush.xpose.msra.mxu0 0.0
    %407 = vmatpush.xpose.msra.mxu0 0.0
    %408 = vmatpush.xpose.msra.mxu0 %v153
    %409 = vmatmul.f32.gmra.mxu0 %v34
    %v410 = vpop.f32.mrf.mxu0
    %v411 = vadd.f32 %v376, %v410
    %412 = vmatmul.f32.gmra.mxu0 %v50
    %v413 = vpop.f32.mrf.mxu0
    %v414 = vadd.f32 %v379, %v413
    %415 = vmatmul.f32.gmra.mxu0 %v66
    %v416 = vpop.f32.mrf.mxu0
    %v417 = vadd.f32 %v382, %v416
    %418 = vmatmul.f32.gmra.mxu0 %v82
    %v419 = vpop.f32.mrf.mxu0
    %v420 = vadd.f32 %v385, %v419
    %421 = vmatmul.f32.gmra.mxu0 %v98
    %v422 = vpop.f32.mrf.mxu0
    %v423 = vadd.f32 %v388, %v422
    %424 = vmatmul.f32.gmra.mxu0 %v114
    %v425 = vpop.f32.mrf.mxu0
    %v426 = vadd.f32 %v391, %v425
    %427 = vdwg.mxu0
    %428 = vmatpush.xpose.msra.mxu0 0.0
    %429 = vmatpush.xpose.msra.mxu0 0.0
    %430 = vmatpush.xpose.msra.mxu0 0.0
    %431 = vmatpush.xpose.msra.mxu0 0.0
    %432 = vmatpush.xpose.msra.mxu0 0.0
    %433 = vmatpush.xpose.msra.mxu0 0.0
    %434 = vmatpush.xpose.msra.mxu0 0.0
    %435 = vmatpush.xpose.msra.mxu0 0.0
    %436 = vmatpush.xpose.msra.mxu0 0.0
    %437 = vmatpush.xpose.msra.mxu0 0.0
    %438 = vmatpush.xpose.msra.mxu0 0.0
    %439 = vmatpush.xpose.msra.mxu0 0.0
    %440 = vmatpush.xpose.msra.mxu0 0.0
    %441 = vmatpush.xpose.msra.mxu0 0.0
    %442 = vmatpush.xpose.msra.mxu0 0.0
    %443 = vmatpush.xpose.msra.mxu0 %v154
    %444 = vmatmul.f32.gmra.mxu0 %v35
    %v445 = vpop.f32.mrf.mxu0
    %v446 = vadd.f32 %v411, %v445
    %447 = vmatmul.f32.gmra.mxu0 %v51
    %v448 = vpop.f32.mrf.mxu0
    %v449 = vadd.f32 %v414, %v448
    %450 = vmatmul.f32.gmra.mxu0 %v67
    %v451 = vpop.f32.mrf.mxu0
    %v452 = vadd.f32 %v417, %v451
    %453 = vmatmul.f32.gmra.mxu0 %v83
    %v454 = vpop.f32.mrf.mxu0
    %v455 = vadd.f32 %v420, %v454
    %456 = vmatmul.f32.gmra.mxu0 %v99
    %v457 = vpop.f32.mrf.mxu0
    %v458 = vadd.f32 %v423, %v457
    %459 = vmatmul.f32.gmra.mxu0 %v115
    %v460 = vpop.f32.mrf.mxu0
    %v461 = vadd.f32 %v426, %v460
    %462 = vdwg.mxu0
    %463 = vmatpush.xpose.msra.mxu0 0.0
    %464 = vmatpush.xpose.msra.mxu0 0.0
    %465 = vmatpush.xpose.msra.mxu0 0.0
    %466 = vmatpush.xpose.msra.mxu0 0.0
    %467 = vmatpush.xpose.msra.mxu0 0.0
    %468 = vmatpush.xpose.msra.mxu0 0.0
    %469 = vmatpush.xpose.msra.mxu0 0.0
    %470 = vmatpush.xpose.msra.mxu0 0.0
    %471 = vmatpush.xpose.msra.mxu0 0.0
    %472 = vmatpush.xpose.msra.mxu0 0.0
    %473 = vmatpush.xpose.msra.mxu0 0.0
    %474 = vmatpush.xpose.msra.mxu0 0.0
    %475 = vmatpush.xpose.msra.mxu0 0.0
    %476 = vmatpush.xpose.msra.mxu0 0.0
    %477 = vmatpush.xpose.msra.mxu0 0.0
    %478 = vmatpush.xpose.msra.mxu0 %v159
    %479 = vmatmul.f32.gmra.mxu0 %v36
    %v480 = vpop.f32.mrf.mxu0
    %v481 = vadd.f32 %v446, %v480
    %482 = vmatmul.f32.gmra.mxu0 %v52
    %v483 = vpop.f32.mrf.mxu0
    %v484 = vadd.f32 %v449, %v483
    %485 = vmatmul.f32.gmra.mxu0 %v68
    %v486 = vpop.f32.mrf.mxu0
    %v487 = vadd.f32 %v452, %v486
    %488 = vmatmul.f32.gmra.mxu0 %v84
    %v489 = vpop.f32.mrf.mxu0
    %v490 = vadd.f32 %v455, %v489
    %491 = vmatmul.f32.gmra.mxu0 %v100
    %v492 = vpop.f32.mrf.mxu0
    %v493 = vadd.f32 %v458, %v492
    %494 = vmatmul.f32.gmra.mxu0 %v116
    %v495 = vpop.f32.mrf.mxu0
    %v496 = vadd.f32 %v461, %v495
    %497 = vdwg.mxu0
    %498 = vmatpush.xpose.msra.mxu0 0.0
    %499 = vmatpush.xpose.msra.mxu0 0.0
    %500 = vmatpush.xpose.msra.mxu0 0.0
    %501 = vmatpush.xpose.msra.mxu0 0.0
    %502 = vmatpush.xpose.msra.mxu0 0.0
    %503 = vmatpush.xpose.msra.mxu0 0.0
    %504 = vmatpush.xpose.msra.mxu0 0.0
    %505 = vmatpush.xpose.msra.mxu0 0.0
    %506 = vmatpush.xpose.msra.mxu0 0.0
    %507 = vmatpush.xpose.msra.mxu0 0.0
    %508 = vmatpush.xpose.msra.mxu0 0.0
    %509 = vmatpush.xpose.msra.mxu0 0.0
    %510 = vmatpush.xpose.msra.mxu0 0.0
    %511 = vmatpush.xpose.msra.mxu0 0.0
    %512 = vmatpush.xpose.msra.mxu0 0.0
    %513 = vmatpush.xpose.msra.mxu0 %v160
    %514 = vmatmul.f32.gmra.mxu0 %v37
    %v515 = vpop.f32.mrf.mxu0
    %v516 = vadd.f32 %v481, %v515
    %517 = vmatmul.f32.gmra.mxu0 %v53
    %v518 = vpop.f32.mrf.mxu0
    %v519 = vadd.f32 %v484, %v518
    %520 = vmatmul.f32.gmra.mxu0 %v69
    %v521 = vpop.f32.mrf.mxu0
    %v522 = vadd.f32 %v487, %v521
    %523 = vmatmul.f32.gmra.mxu0 %v85
    %v524 = vpop.f32.mrf.mxu0
    %v525 = vadd.f32 %v490, %v524
    %526 = vmatmul.f32.gmra.mxu0 %v101
    %v527 = vpop.f32.mrf.mxu0
    %v528 = vadd.f32 %v493, %v527
    %529 = vmatmul.f32.gmra.mxu0 %v117
    %v530 = vpop.f32.mrf.mxu0
    %v531 = vadd.f32 %v496, %v530
    %532 = vdwg.mxu0
    %533 = vmatpush.xpose.msra.mxu0 0.0
    %534 = vmatpush.xpose.msra.mxu0 0.0
    %535 = vmatpush.xpose.msra.mxu0 0.0
    %536 = vmatpush.xpose.msra.mxu0 0.0
    %537 = vmatpush.xpose.msra.mxu0 0.0
    %538 = vmatpush.xpose.msra.mxu0 0.0
    %539 = vmatpush.xpose.msra.mxu0 0.0
    %540 = vmatpush.xpose.msra.mxu0 0.0
    %541 = vmatpush.xpose.msra.mxu0 0.0
    %542 = vmatpush.xpose.msra.mxu0 0.0
    %543 = vmatpush.xpose.msra.mxu0 0.0
    %544 = vmatpush.xpose.msra.mxu0 0.0
    %545 = vmatpush.xpose.msra.mxu0 0.0
    %546 = vmatpush.xpose.msra.mxu0 0.0
    %547 = vmatpush.xpose.msra.mxu0 0.0
    %548 = vmatpush.xpose.msra.mxu0 %v161
    %549 = vmatmul.f32.gmra.mxu0 %v38
    %v550 = vpop.f32.mrf.mxu0
    %v551 = vadd.f32 %v516, %v550
    %552 = vmatmul.f32.gmra.mxu0 %v54
    %v553 = vpop.f32.mrf.mxu0
    %v554 = vadd.f32 %v519, %v553
    %555 = vmatmul.f32.gmra.mxu0 %v70
    %v556 = vpop.f32.mrf.mxu0
    %v557 = vadd.f32 %v522, %v556
    %558 = vmatmul.f32.gmra.mxu0 %v86
    %v559 = vpop.f32.mrf.mxu0
    %v560 = vadd.f32 %v525, %v559
    %561 = vmatmul.f32.gmra.mxu0 %v102
    %v562 = vpop.f32.mrf.mxu0
    %v563 = vadd.f32 %v528, %v562
    %564 = vmatmul.f32.gmra.mxu0 %v118
    %v565 = vpop.f32.mrf.mxu0
    %v566 = vadd.f32 %v531, %v565
    %567 = vdwg.mxu0
    %568 = vmatpush.xpose.msra.mxu0 0.0
    %569 = vmatpush.xpose.msra.mxu0 0.0
    %570 = vmatpush.xpose.msra.mxu0 0.0
    %571 = vmatpush.xpose.msra.mxu0 0.0
    %572 = vmatpush.xpose.msra.mxu0 0.0
    %573 = vmatpush.xpose.msra.mxu0 0.0
    %574 = vmatpush.xpose.msra.mxu0 0.0
    %575 = vmatpush.xpose.msra.mxu0 0.0
    %576 = vmatpush.xpose.msra.mxu0 0.0
    %577 = vmatpush.xpose.msra.mxu0 0.0
    %578 = vmatpush.xpose.msra.mxu0 0.0
    %579 = vmatpush.xpose.msra.mxu0 0.0
    %580 = vmatpush.xpose.msra.mxu0 0.0
    %581 = vmatpush.xpose.msra.mxu0 0.0
    %582 = vmatpush.xpose.msra.mxu0 0.0
    %583 = vmatpush.xpose.msra.mxu0 %v162
    %584 = vmatmul.f32.gmra.mxu0 %v39
    %v585 = vpop.f32.mrf.mxu0
    %v586 = vadd.f32 %v551, %v585
    %587 = vmatmul.f32.gmra.mxu0 %v55
    %v588 = vpop.f32.mrf.mxu0
    %v589 = vadd.f32 %v554, %v588
    %590 = vmatmul.f32.gmra.mxu0 %v71
    %v591 = vpop.f32.mrf.mxu0
    %v592 = vadd.f32 %v557, %v591
    %593 = vmatmul.f32.gmra.mxu0 %v87
    %v594 = vpop.f32.mrf.mxu0
    %v595 = vadd.f32 %v560, %v594
    %596 = vmatmul.f32.gmra.mxu0 %v103
    %v597 = vpop.f32.mrf.mxu0
    %v598 = vadd.f32 %v563, %v597
    %599 = vmatmul.f32.gmra.mxu0 %v119
    %v600 = vpop.f32.mrf.mxu0
    %v601 = vadd.f32 %v566, %v600
    %602 = vdwg.mxu0
    %603 = vmatpush.xpose.msra.mxu0 0.0
    %604 = vmatpush.xpose.msra.mxu0 0.0
    %605 = vmatpush.xpose.msra.mxu0 0.0
    %606 = vmatpush.xpose.msra.mxu0 0.0
    %607 = vmatpush.xpose.msra.mxu0 0.0
    %608 = vmatpush.xpose.msra.mxu0 0.0
    %609 = vmatpush.xpose.msra.mxu0 0.0
    %610 = vmatpush.xpose.msra.mxu0 0.0
    %611 = vmatpush.xpose.msra.mxu0 0.0
    %612 = vmatpush.xpose.msra.mxu0 0.0
    %613 = vmatpush.xpose.msra.mxu0 0.0
    %614 = vmatpush.xpose.msra.mxu0 0.0
    %615 = vmatpush.xpose.msra.mxu0 0.0
    %616 = vmatpush.xpose.msra.mxu0 0.0
    %617 = vmatpush.xpose.msra.mxu0 0.0
    %618 = vmatpush.xpose.msra.mxu0 %v163
    %619 = vmatmul.f32.gmra.mxu0 %v40
    %v620 = vpop.f32.mrf.mxu0
    %v621 = vadd.f32 %v586, %v620
    %622 = vmatmul.f32.gmra.mxu0 %v56
    %v623 = vpop.f32.mrf.mxu0
    %v624 = vadd.f32 %v589, %v623
    %625 = vmatmul.f32.gmra.mxu0 %v72
    %v626 = vpop.f32.mrf.mxu0
    %v627 = vadd.f32 %v592, %v626
    %628 = vmatmul.f32.gmra.mxu0 %v88
    %v629 = vpop.f32.mrf.mxu0
    %v630 = vadd.f32 %v595, %v629
    %631 = vmatmul.f32.gmra.mxu0 %v104
    %v632 = vpop.f32.mrf.mxu0
    %v633 = vadd.f32 %v598, %v632
    %634 = vmatmul.f32.gmra.mxu0 %v120
    %v635 = vpop.f32.mrf.mxu0
    %v636 = vadd.f32 %v601, %v635
    %637 = vdwg.mxu0
    %638 = vmatpush.xpose.msra.mxu0 0.0
    %639 = vmatpush.xpose.msra.mxu0 0.0
    %640 = vmatpush.xpose.msra.mxu0 0.0
    %641 = vmatpush.xpose.msra.mxu0 0.0
    %642 = vmatpush.xpose.msra.mxu0 0.0
    %643 = vmatpush.xpose.msra.mxu0 0.0
    %644 = vmatpush.xpose.msra.mxu0 0.0
    %645 = vmatpush.xpose.msra.mxu0 0.0
    %646 = vmatpush.xpose.msra.mxu0 0.0
    %647 = vmatpush.xpose.msra.mxu0 0.0
    %648 = vmatpush.xpose.msra.mxu0 0.0
    %649 = vmatpush.xpose.msra.mxu0 0.0
    %650 = vmatpush.xpose.msra.mxu0 0.0
    %651 = vmatpush.xpose.msra.mxu0 0.0
    %652 = vmatpush.xpose.msra.mxu0 0.0
    %653 = vmatpush.xpose.msra.mxu0 %v164
    %654 = vmatmul.f32.gmra.mxu0 %v41
    %v655 = vpop.f32.mrf.mxu0
    %v656 = vadd.f32 %v621, %v655
    %657 = vmatmul.f32.gmra.mxu0 %v57
    %v658 = vpop.f32.mrf.mxu0
    %v659 = vadd.f32 %v624, %v658
    %660 = vmatmul.f32.gmra.mxu0 %v73
    %v661 = vpop.f32.mrf.mxu0
    %v662 = vadd.f32 %v627, %v661
    %663 = vmatmul.f32.gmra.mxu0 %v89
    %v664 = vpop.f32.mrf.mxu0
    %v665 = vadd.f32 %v630, %v664
    %666 = vmatmul.f32.gmra.mxu0 %v105
    %v667 = vpop.f32.mrf.mxu0
    %v668 = vadd.f32 %v633, %v667
    %669 = vmatmul.f32.gmra.mxu0 %v121
    %v670 = vpop.f32.mrf.mxu0
    %v671 = vadd.f32 %v636, %v670
    %672 = vdwg.mxu0
    %673 = vmatpush.xpose.msra.mxu0 0.0
    %674 = vmatpush.xpose.msra.mxu0 0.0
    %675 = vmatpush.xpose.msra.mxu0 0.0
    %676 = vmatpush.xpose.msra.mxu0 0.0
    %677 = vmatpush.xpose.msra.mxu0 0.0
    %678 = vmatpush.xpose.msra.mxu0 0.0
    %679 = vmatpush.xpose.msra.mxu0 0.0
    %680 = vmatpush.xpose.msra.mxu0 0.0
    %681 = vmatpush.xpose.msra.mxu0 0.0
    %682 = vmatpush.xpose.msra.mxu0 0.0
    %683 = vmatpush.xpose.msra.mxu0 0.0
    %684 = vmatpush.xpose.msra.mxu0 0.0
    %685 = vmatpush.xpose.msra.mxu0 0.0
    %686 = vmatpush.xpose.msra.mxu0 0.0
    %687 = vmatpush.xpose.msra.mxu0 0.0
    %688 = vmatpush.xpose.msra.mxu0 %v165
    %689 = vmatmul.f32.gmra.mxu0 %v42
    %v690 = vpop.f32.mrf.mxu0
    %v691 = vadd.f32 %v656, %v690
    %692 = vmatmul.f32.gmra.mxu0 %v58
    %v693 = vpop.f32.mrf.mxu0
    %v694 = vadd.f32 %v659, %v693
    %695 = vmatmul.f32.gmra.mxu0 %v74
    %v696 = vpop.f32.mrf.mxu0
    %v697 = vadd.f32 %v662, %v696
    %698 = vmatmul.f32.gmra.mxu0 %v90
    %v699 = vpop.f32.mrf.mxu0
    %v700 = vadd.f32 %v665, %v699
    %701 = vmatmul.f32.gmra.mxu0 %v106
    %v702 = vpop.f32.mrf.mxu0
    %v703 = vadd.f32 %v668, %v702
    %704 = vmatmul.f32.gmra.mxu0 %v122
    %v705 = vpop.f32.mrf.mxu0
    %v706 = vadd.f32 %v671, %v705
    %707 = vdwg.mxu0
    %708 = vmatpush.xpose.msra.mxu0 0.0
    %709 = vmatpush.xpose.msra.mxu0 0.0
    %710 = vmatpush.xpose.msra.mxu0 0.0
    %711 = vmatpush.xpose.msra.mxu0 0.0
    %712 = vmatpush.xpose.msra.mxu0 0.0
    %713 = vmatpush.xpose.msra.mxu0 0.0
    %714 = vmatpush.xpose.msra.mxu0 0.0
    %715 = vmatpush.xpose.msra.mxu0 0.0
    %716 = vmatpush.xpose.msra.mxu0 0.0
    %717 = vmatpush.xpose.msra.mxu0 0.0
    %718 = vmatpush.xpose.msra.mxu0 0.0
    %719 = vmatpush.xpose.msra.mxu0 0.0
    %720 = vmatpush.xpose.msra.mxu0 0.0
    %721 = vmatpush.xpose.msra.mxu0 0.0
    %722 = vmatpush.xpose.msra.mxu0 0.0
    %723 = vmatpush.xpose.msra.mxu0 %v166
    %724 = vmatmul.f32.gmra.mxu0 %v43
    %v725 = vpop.f32.mrf.mxu0
    %v726 = vadd.f32 %v691, %v725
    %727 = vmatmul.f32.gmra.mxu0 %v59
    %v728 = vpop.f32.mrf.mxu0
    %v729 = vadd.f32 %v694, %v728
    %730 = vmatmul.f32.gmra.mxu0 %v75
    %v731 = vpop.f32.mrf.mxu0
    %v732 = vadd.f32 %v697, %v731
    %733 = vmatmul.f32.gmra.mxu0 %v91
    %v734 = vpop.f32.mrf.mxu0
    %v735 = vadd.f32 %v700, %v734
    %736 = vmatmul.f32.gmra.mxu0 %v107
    %v737 = vpop.f32.mrf.mxu0
    %v738 = vadd.f32 %v703, %v737
    %739 = vmatmul.f32.gmra.mxu0 %v123
    %v740 = vpop.f32.mrf.mxu0
    %v741 = vadd.f32 %v706, %v740
    %742 = vdwg.mxu0
    %vm743 = vcmask 31744
    %v744 = vsel %vm743, %v726, -inf
    %v745 = vsel %vm743, %v729, -inf
    %v746 = vmax.f32 %v744, %v745
    %v747 = vrot.slane %v746, 4
    %v748 = vmax.f32 %v746, %v747
    %v749 = vrot.slane %v748, 2
    %v750 = vmax.f32 %v748, %v749
    %v751 = vrot.slane %v750, 1
    %v752 = vmax.f32 %v750, %v751
    %v753 = vsel %vm743, %v732, -inf
    %v754 = vsel %vm743, %v735, -inf
    %v755 = vmax.f32 %v753, %v754
    %v756 = vrot.slane %v755, 4
    %v757 = vmax.f32 %v755, %v756
    %v758 = vrot.slane %v757, 2
    %v759 = vmax.f32 %v757, %v758
    %v760 = vrot.slane %v759, 1
    %v761 = vmax.f32 %v759, %v760
    %v762 = vsel %vm743, %v738, -inf
    %v763 = vsel %vm743, %v741, -inf
    %v764 = vmax.f32 %v762, %v763
    %v765 = vrot.slane %v764, 4
    %v766 = vmax.f32 %v764, %v765
    %v767 = vrot.slane %v766, 2
    %v768 = vmax.f32 %v766, %v767
    %v769 = vrot.slane %v768, 1
    %v770 = vmax.f32 %v768, %v769
    %v771 = vld [vmem:[%s4] sm:$0xf]
    %vm775 = vcmask 1041409
    %v776 = vsel %vm775, %v761, %v752
    %vm777 = vcmask 1042434
    %v778 = vsel %vm777, %v770, %v776
    %v779 = vsel %vm743, %v778, 0
    %vm781 = vcmask 1043456
    %v783 = vsel %vm781, %v771, 0
    %785 = vmatpush.msra.mxu0 0.0
    %786 = vmatpush.msra.mxu0 0.0
    %787 = vmatpush.msra.mxu0 0.0
    %788 = vmatpush.msra.mxu0 0.0
    %789 = vmatpush.msra.mxu0 0.0
    %790 = vmatpush.msra.mxu0 0.0
    %791 = vmatpush.msra.mxu0 0.0
    %792 = vmatpush.msra.mxu0 0.0
    %793 = vmatpush.msra.mxu0 0.0
    %794 = vmatpush.msra.mxu0 0.0
    %795 = vmatpush.msra.mxu0 0.0
    %796 = vmatpush.msra.mxu0 0.0
    %797 = vmatpush.msra.mxu0 0.0
    %798 = vmatpush.msra.mxu0 0.0
    %799 = vmatpush.msra.mxu0 0.0
    %800 = vmatpush.msra.mxu0 %v783
    %801 = vmatmul.f32.gmra.mxu0 %v779
    %v802 = vpop.f32.mrf.mxu0
    %v803 = vadd.f32 0.0, %v802
    %804 = vdwg.mxu0
    %v806 = vperm.slane %v27, 0
    %v808 = vadd.f32 %v806, %v803
    %v809 = vld [vmem:[%s2] sm:$0xff]
    %v810 = vld [vmem:[%s2 + $0x8] sm:$0xff]
    %v811 = vld [vmem:[%s2 + $0x10] sm:$0xff]
    %v812 = vld [vmem:[%s2 + $0x18] sm:$0xff]
    %v813 = vld [vmem:[%s2 + $0x20] sm:$0xff]
    %v814 = vld [vmem:[%s2 + $0x28] sm:$0xff]
    %v815 = vld [vmem:[%s2 + $0x30] sm:$0xff]
    %v816 = vld [vmem:[%s2 + $0x38] sm:$0xff]
    %v817 = vld [vmem:[%s2 + $0x40] sm:$0xff]
    %v818 = vld [vmem:[%s2 + $0x48] sm:$0xff]
    %v819 = vld [vmem:[%s2 + $0x50] sm:$0xff]
    %v820 = vld [vmem:[%s2 + $0x58] sm:$0xff]
    %v821 = vld [vmem:[%s2 + $0x60] sm:$0xff]
    %v822 = vld [vmem:[%s2 + $0x68] sm:$0xff]
    %v823 = vld [vmem:[%s2 + $0x70] sm:$0xff]
    %v824 = vld [vmem:[%s2 + $0x78] sm:$0xff]
    %v825 = vld [vmem:[%s2 + $0x80] sm:$0xff]
    %v826 = vld [vmem:[%s2 + $0x88] sm:$0xff]
    %v827 = vld [vmem:[%s2 + $0x90] sm:$0xff]
    %v828 = vld [vmem:[%s2 + $0x98] sm:$0xff]
    %v829 = vld [vmem:[%s2 + $0xa0] sm:$0xff]
    %v830 = vld [vmem:[%s2 + $0xa8] sm:$0xff]
    %v831 = vld [vmem:[%s2 + $0xb0] sm:$0xff]
    %v832 = vld [vmem:[%s2 + $0xb8] sm:$0xff]
    %v833 = vld [vmem:[%s2 + $0xc0] sm:$0xff]
    %v834 = vld [vmem:[%s2 + $0xc8] sm:$0xff]
    %v835 = vld [vmem:[%s2 + $0xd0] sm:$0xff]
    %v836 = vld [vmem:[%s2 + $0xd8] sm:$0xff]
    %v837 = vld [vmem:[%s2 + $0xe0] sm:$0xff]
    %v838 = vld [vmem:[%s2 + $0xe8] sm:$0xff]
    %v839 = vld [vmem:[%s2 + $0xf0] sm:$0xff]
    %v840 = vld [vmem:[%s2 + $0xf8] sm:$0xff]
    %v841 = vld [vmem:[%s2 + $0x100] sm:$0xff]
    %v842 = vld [vmem:[%s2 + $0x108] sm:$0xff]
    %v843 = vld [vmem:[%s2 + $0x110] sm:$0xff]
    %v844 = vld [vmem:[%s2 + $0x118] sm:$0xff]
    %v845 = vld [vmem:[%s2 + $0x120] sm:$0xff]
    %v846 = vld [vmem:[%s2 + $0x128] sm:$0xff]
    %v847 = vld [vmem:[%s2 + $0x130] sm:$0xff]
    %v848 = vld [vmem:[%s2 + $0x138] sm:$0xff]
    %v849 = vld [vmem:[%s2 + $0x140] sm:$0xff]
    %v850 = vld [vmem:[%s2 + $0x148] sm:$0xff]
    %v851 = vld [vmem:[%s2 + $0x150] sm:$0xff]
    %v852 = vld [vmem:[%s2 + $0x158] sm:$0xff]
    %v853 = vld [vmem:[%s2 + $0x160] sm:$0xff]
    %v854 = vld [vmem:[%s2 + $0x168] sm:$0xff]
    %v855 = vld [vmem:[%s2 + $0x170] sm:$0xff]
    %v856 = vld [vmem:[%s2 + $0x178] sm:$0xff]
    %v857 = vld [vmem:[%s2 + $0x180] sm:$0xff]
    %v858 = vld [vmem:[%s2 + $0x188] sm:$0xff]
    %v859 = vld [vmem:[%s2 + $0x190] sm:$0xff]
    %v860 = vld [vmem:[%s2 + $0x198] sm:$0xff]
    %v861 = vld [vmem:[%s2 + $0x1a0] sm:$0xff]
    %v862 = vld [vmem:[%s2 + $0x1a8] sm:$0xff]
    %v863 = vld [vmem:[%s2 + $0x1b0] sm:$0xff]
    %v864 = vld [vmem:[%s2 + $0x1b8] sm:$0xff]
    %v865 = vld [vmem:[%s2 + $0x1c0] sm:$0xff]
    %v866 = vld [vmem:[%s2 + $0x1c8] sm:$0xff]
    %v867 = vld [vmem:[%s2 + $0x1d0] sm:$0xff]
    %v868 = vld [vmem:[%s2 + $0x1d8] sm:$0xff]
    %v869 = vld [vmem:[%s2 + $0x1e0] sm:$0xff]
    %v870 = vld [vmem:[%s2 + $0x1e8] sm:$0xff]
    %v871 = vld [vmem:[%s2 + $0x1f0] sm:$0xff]
    %v872 = vld [vmem:[%s2 + $0x1f8] sm:$0xff]
    %v873 = vld [vmem:[%s2 + $0x200] sm:$0xff]
    %v874 = vld [vmem:[%s2 + $0x208] sm:$0xff]
    %v875 = vld [vmem:[%s2 + $0x210] sm:$0xff]
    %v876 = vld [vmem:[%s2 + $0x218] sm:$0xff]
    %v877 = vld [vmem:[%s2 + $0x220] sm:$0xff]
    %v878 = vld [vmem:[%s2 + $0x228] sm:$0xff]
    %v879 = vld [vmem:[%s2 + $0x230] sm:$0xff]
    %v880 = vld [vmem:[%s2 + $0x238] sm:$0xff]
    %v881 = vld [vmem:[%s2 + $0x240] sm:$0xff]
    %v882 = vld [vmem:[%s2 + $0x248] sm:$0xff]
    %v883 = vld [vmem:[%s2 + $0x250] sm:$0xff]
    %v884 = vld [vmem:[%s2 + $0x258] sm:$0xff]
    %v885 = vld [vmem:[%s2 + $0x260] sm:$0xff]
    %v886 = vld [vmem:[%s2 + $0x268] sm:$0xff]
    %v887 = vld [vmem:[%s2 + $0x270] sm:$0xff]
    %v888 = vld [vmem:[%s2 + $0x278] sm:$0xff]
    %v889 = vld [vmem:[%s2 + $0x280] sm:$0xff]
    %v890 = vld [vmem:[%s2 + $0x288] sm:$0xff]
    %v891 = vld [vmem:[%s2 + $0x290] sm:$0xff]
    %v892 = vld [vmem:[%s2 + $0x298] sm:$0xff]
    %v893 = vld [vmem:[%s2 + $0x2a0] sm:$0xff]
    %v894 = vld [vmem:[%s2 + $0x2a8] sm:$0xff]
    %v895 = vld [vmem:[%s2 + $0x2b0] sm:$0xff]
    %v896 = vld [vmem:[%s2 + $0x2b8] sm:$0xff]
    %v897 = vld [vmem:[%s2 + $0x2c0] sm:$0xff]
    %v898 = vld [vmem:[%s2 + $0x2c8] sm:$0xff]
    %v899 = vld [vmem:[%s2 + $0x2d0] sm:$0xff]
    %v900 = vld [vmem:[%s2 + $0x2d8] sm:$0xff]
    %v901 = vld [vmem:[%s2 + $0x2e0] sm:$0xff]
    %v902 = vld [vmem:[%s2 + $0x2e8] sm:$0xff]
    %v903 = vld [vmem:[%s2 + $0x2f0] sm:$0xff]
    %v904 = vld [vmem:[%s2 + $0x2f8] sm:$0xff]
    %v905 = vld [vmem:[%s2 + $0x300] sm:$0xff]
    %v906 = vld [vmem:[%s2 + $0x308] sm:$0xff]
    %v907 = vld [vmem:[%s2 + $0x310] sm:$0xff]
    %v908 = vld [vmem:[%s2 + $0x318] sm:$0xff]
    %v909 = vld [vmem:[%s2 + $0x320] sm:$0xff]
    %v910 = vld [vmem:[%s2 + $0x328] sm:$0xff]
    %v911 = vld [vmem:[%s2 + $0x330] sm:$0xff]
    %v912 = vld [vmem:[%s2 + $0x338] sm:$0xff]
    %v913 = vld [vmem:[%s2 + $0x340] sm:$0xff]
    %v914 = vld [vmem:[%s2 + $0x348] sm:$0xff]
    %v915 = vld [vmem:[%s2 + $0x350] sm:$0xff]
    %v916 = vld [vmem:[%s2 + $0x358] sm:$0xff]
    %v917 = vld [vmem:[%s2 + $0x360] sm:$0xff]
    %v918 = vld [vmem:[%s2 + $0x368] sm:$0xff]
    %v919 = vld [vmem:[%s2 + $0x370] sm:$0xff]
    %v920 = vld [vmem:[%s2 + $0x378] sm:$0xff]
    %v921 = vld [vmem:[%s2 + $0x380] sm:$0xff]
    %v922 = vld [vmem:[%s2 + $0x388] sm:$0xff]
    %v923 = vld [vmem:[%s2 + $0x390] sm:$0xff]
    %v924 = vld [vmem:[%s2 + $0x398] sm:$0xff]
    %v925 = vld [vmem:[%s2 + $0x3a0] sm:$0xff]
    %v926 = vld [vmem:[%s2 + $0x3a8] sm:$0xff]
    %v927 = vld [vmem:[%s2 + $0x3b0] sm:$0xff]
    %v928 = vld [vmem:[%s2 + $0x3b8] sm:$0xff]
    %v929 = vld [vmem:[%s2 + $0x3c0] sm:$0xff]
    %v930 = vld [vmem:[%s2 + $0x3c8] sm:$0xff]
    %v931 = vld [vmem:[%s2 + $0x3d0] sm:$0xff]
    %v932 = vld [vmem:[%s2 + $0x3d8] sm:$0xff]
    %v933 = vld [vmem:[%s2 + $0x3e0] sm:$0xff]
    %v934 = vld [vmem:[%s2 + $0x3e8] sm:$0xff]
    %v935 = vld [vmem:[%s2 + $0x3f0] sm:$0xff]
    %v936 = vld [vmem:[%s2 + $0x3f8] sm:$0xff]
    %v937 = vld [vmem:[%s2 + $0x400] sm:$0xff]
    %v938 = vld [vmem:[%s2 + $0x408] sm:$0xff]
    %v939 = vld [vmem:[%s2 + $0x410] sm:$0xff]
    %v940 = vld [vmem:[%s2 + $0x418] sm:$0xff]
    %v941 = vld [vmem:[%s2 + $0x420] sm:$0xff]
    %v942 = vld [vmem:[%s2 + $0x428] sm:$0xff]
    %v943 = vld [vmem:[%s2 + $0x430] sm:$0xff]
    %v944 = vld [vmem:[%s2 + $0x438] sm:$0xff]
    %v945 = vld [vmem:[%s2 + $0x440] sm:$0xff]
    %v946 = vld [vmem:[%s2 + $0x448] sm:$0xff]
    %v947 = vld [vmem:[%s2 + $0x450] sm:$0xff]
    %v948 = vld [vmem:[%s2 + $0x458] sm:$0xff]
    %v949 = vld [vmem:[%s2 + $0x460] sm:$0xff]
    %v950 = vld [vmem:[%s2 + $0x468] sm:$0xff]
    %v951 = vld [vmem:[%s2 + $0x470] sm:$0xff]
    %v952 = vld [vmem:[%s2 + $0x478] sm:$0xff]
    %v953 = vld [vmem:[%s2 + $0x480] sm:$0xff]
    %v954 = vld [vmem:[%s2 + $0x488] sm:$0xff]
    %v955 = vld [vmem:[%s2 + $0x490] sm:$0xff]
    %v956 = vld [vmem:[%s2 + $0x498] sm:$0xff]
    %v957 = vld [vmem:[%s2 + $0x4a0] sm:$0xff]
    %v958 = vld [vmem:[%s2 + $0x4a8] sm:$0xff]
    %v959 = vld [vmem:[%s2 + $0x4b0] sm:$0xff]
    %v960 = vld [vmem:[%s2 + $0x4b8] sm:$0xff]
    %v961 = vld [vmem:[%s2 + $0x4c0] sm:$0xff]
    %v962 = vld [vmem:[%s2 + $0x4c8] sm:$0xff]
    %v963 = vld [vmem:[%s2 + $0x4d0] sm:$0xff]
    %v964 = vld [vmem:[%s2 + $0x4d8] sm:$0xff]
    %v965 = vld [vmem:[%s2 + $0x4e0] sm:$0xff]
    %v966 = vld [vmem:[%s2 + $0x4e8] sm:$0xff]
    %v967 = vld [vmem:[%s2 + $0x4f0] sm:$0xff]
    %v968 = vld [vmem:[%s2 + $0x4f8] sm:$0xff]
    %v969 = vld [vmem:[%s2 + $0x500] sm:$0xff]
    %v970 = vld [vmem:[%s2 + $0x508] sm:$0xff]
    %v971 = vld [vmem:[%s2 + $0x510] sm:$0xff]
    %v972 = vld [vmem:[%s2 + $0x518] sm:$0xff]
    %v973 = vld [vmem:[%s2 + $0x520] sm:$0xff]
    %v974 = vld [vmem:[%s2 + $0x528] sm:$0xff]
    %v975 = vld [vmem:[%s2 + $0x530] sm:$0xff]
    %v976 = vld [vmem:[%s2 + $0x538] sm:$0xff]
    %v977 = vld [vmem:[%s2 + $0x540] sm:$0xff]
    %v978 = vld [vmem:[%s2 + $0x548] sm:$0xff]
    %v979 = vld [vmem:[%s2 + $0x550] sm:$0xff]
    %v980 = vld [vmem:[%s2 + $0x558] sm:$0xff]
    %v981 = vld [vmem:[%s2 + $0x560] sm:$0xff]
    %v982 = vld [vmem:[%s2 + $0x568] sm:$0xff]
    %v983 = vld [vmem:[%s2 + $0x570] sm:$0xff]
    %v984 = vld [vmem:[%s2 + $0x578] sm:$0xff]
    %v985 = vld [vmem:[%s2 + $0x580] sm:$0xff]
    %v986 = vld [vmem:[%s2 + $0x588] sm:$0xff]
    %v987 = vld [vmem:[%s2 + $0x590] sm:$0xff]
    %v988 = vld [vmem:[%s2 + $0x598] sm:$0xff]
    %v989 = vld [vmem:[%s2 + $0x5a0] sm:$0xff]
    %v990 = vld [vmem:[%s2 + $0x5a8] sm:$0xff]
    %v991 = vld [vmem:[%s2 + $0x5b0] sm:$0xff]
    %v992 = vld [vmem:[%s2 + $0x5b8] sm:$0xff]
    %v993 = vld [vmem:[%s2 + $0x5c0] sm:$0xff]
    %v994 = vld [vmem:[%s2 + $0x5c8] sm:$0xff]
    %v995 = vld [vmem:[%s2 + $0x5d0] sm:$0xff]
    %v996 = vld [vmem:[%s2 + $0x5d8] sm:$0xff]
    %v997 = vld [vmem:[%s2 + $0x5e0] sm:$0xff]
    %v998 = vld [vmem:[%s2 + $0x5e8] sm:$0xff]
    %v999 = vld [vmem:[%s2 + $0x5f0] sm:$0xff]
    %v1000 = vld [vmem:[%s2 + $0x5f8] sm:$0xff]
    %v1001 = vld [vmem:[%s3] sm:$0xff]
    %v1002 = vld [vmem:[%s3 + $0x8] sm:$0xff]
    %v1003 = vld [vmem:[%s3 + $0x10] sm:$0xff]
    %v1004 = vld [vmem:[%s3 + $0x18] sm:$0xff]
    %v1005 = vld [vmem:[%s3 + $0x20] sm:$0xff]
    %v1006 = vld [vmem:[%s3 + $0x28] sm:$0xff]
    %v1007 = vld [vmem:[%s3 + $0x30] sm:$0xff]
    %v1008 = vld [vmem:[%s3 + $0x38] sm:$0xff]
    %v1009 = vld [vmem:[%s3 + $0x40] sm:$0xff]
    %v1010 = vld [vmem:[%s3 + $0x48] sm:$0xff]
    %v1011 = vld [vmem:[%s3 + $0x50] sm:$0xff]
    %v1012 = vld [vmem:[%s3 + $0x58] sm:$0xff]
    %v1013 = vld [vmem:[%s3 + $0x60] sm:$0xff]
    %v1014 = vld [vmem:[%s3 + $0x68] sm:$0xff]
    %v1015 = vld [vmem:[%s3 + $0x70] sm:$0xff]
    %v1016 = vld [vmem:[%s3 + $0x78] sm:$0xff]
    %v1017 = vld [vmem:[%s3 + $0x80] sm:$0xff]
    %v1018 = vld [vmem:[%s3 + $0x88] sm:$0xff]
    %v1019 = vld [vmem:[%s3 + $0x90] sm:$0xff]
    %v1020 = vld [vmem:[%s3 + $0x98] sm:$0xff]
    %v1021 = vld [vmem:[%s3 + $0xa0] sm:$0xff]
    %v1022 = vld [vmem:[%s3 + $0xa8] sm:$0xff]
    %v1023 = vld [vmem:[%s3 + $0xb0] sm:$0xff]
    %v1024 = vld [vmem:[%s3 + $0xb8] sm:$0xff]
    %v1025 = vld [vmem:[%s3 + $0xc0] sm:$0xff]
    %v1026 = vld [vmem:[%s3 + $0xc8] sm:$0xff]
    %v1027 = vld [vmem:[%s3 + $0xd0] sm:$0xff]
    %v1028 = vld [vmem:[%s3 + $0xd8] sm:$0xff]
    %v1029 = vld [vmem:[%s3 + $0xe0] sm:$0xff]
    %v1030 = vld [vmem:[%s3 + $0xe8] sm:$0xff]
    %v1031 = vld [vmem:[%s3 + $0xf0] sm:$0xff]
    %v1032 = vld [vmem:[%s3 + $0xf8] sm:$0xff]
    %1033 = vmatpush.xpose.msra.mxu0 0.0
    %1034 = vmatpush.xpose.msra.mxu0 0.0
    %1035 = vmatpush.xpose.msra.mxu0 0.0
    %1036 = vmatpush.xpose.msra.mxu0 0.0
    %1037 = vmatpush.xpose.msra.mxu0 0.0
    %1038 = vmatpush.xpose.msra.mxu0 0.0
    %1039 = vmatpush.xpose.msra.mxu0 0.0
    %1040 = vmatpush.xpose.msra.mxu0 0.0
    %1041 = vmatpush.xpose.msra.mxu0 0.0
    %1042 = vmatpush.xpose.msra.mxu0 0.0
    %1043 = vmatpush.xpose.msra.mxu0 0.0
    %1044 = vmatpush.xpose.msra.mxu0 0.0
    %1045 = vmatpush.xpose.msra.mxu0 0.0
    %1046 = vmatpush.xpose.msra.mxu0 0.0
    %1047 = vmatpush.xpose.msra.mxu0 0.0
    %1048 = vmatpush.xpose.msra.mxu0 %v1001
    %1049 = vmatmul.f32.gmra.mxu0 %v809
    %v1050 = vpop.f32.mrf.mxu0
    %v1051 = vadd.f32 0.0, %v1050
    %1052 = vmatmul.f32.gmra.mxu0 %v841
    %v1053 = vpop.f32.mrf.mxu0
    %v1054 = vadd.f32 0.0, %v1053
    %1055 = vmatmul.f32.gmra.mxu0 %v873
    %v1056 = vpop.f32.mrf.mxu0
    %v1057 = vadd.f32 0.0, %v1056
    %1058 = vmatmul.f32.gmra.mxu0 %v905
    %v1059 = vpop.f32.mrf.mxu0
    %v1060 = vadd.f32 0.0, %v1059
    %1061 = vmatmul.f32.gmra.mxu0 %v937
    %v1062 = vpop.f32.mrf.mxu0
    %v1063 = vadd.f32 0.0, %v1062
    %1064 = vmatmul.f32.gmra.mxu0 %v969
    %v1065 = vpop.f32.mrf.mxu0
    %v1066 = vadd.f32 0.0, %v1065
    %1067 = vdwg.mxu0
    %1068 = vmatpush.xpose.msra.mxu0 0.0
    %1069 = vmatpush.xpose.msra.mxu0 0.0
    %1070 = vmatpush.xpose.msra.mxu0 0.0
    %1071 = vmatpush.xpose.msra.mxu0 0.0
    %1072 = vmatpush.xpose.msra.mxu0 0.0
    %1073 = vmatpush.xpose.msra.mxu0 0.0
    %1074 = vmatpush.xpose.msra.mxu0 0.0
    %1075 = vmatpush.xpose.msra.mxu0 0.0
    %1076 = vmatpush.xpose.msra.mxu0 0.0
    %1077 = vmatpush.xpose.msra.mxu0 0.0
    %1078 = vmatpush.xpose.msra.mxu0 0.0
    %1079 = vmatpush.xpose.msra.mxu0 0.0
    %1080 = vmatpush.xpose.msra.mxu0 0.0
    %1081 = vmatpush.xpose.msra.mxu0 0.0
    %1082 = vmatpush.xpose.msra.mxu0 0.0
    %1083 = vmatpush.xpose.msra.mxu0 %v1002
    %1084 = vmatmul.f32.gmra.mxu0 %v810
    %v1085 = vpop.f32.mrf.mxu0
    %v1086 = vadd.f32 %v1051, %v1085
    %1087 = vmatmul.f32.gmra.mxu0 %v842
    %v1088 = vpop.f32.mrf.mxu0
    %v1089 = vadd.f32 %v1054, %v1088
    %1090 = vmatmul.f32.gmra.mxu0 %v874
    %v1091 = vpop.f32.mrf.mxu0
    %v1092 = vadd.f32 %v1057, %v1091
    %1093 = vmatmul.f32.gmra.mxu0 %v906
    %v1094 = vpop.f32.mrf.mxu0
    %v1095 = vadd.f32 %v1060, %v1094
    %1096 = vmatmul.f32.gmra.mxu0 %v938
    %v1097 = vpop.f32.mrf.mxu0
    %v1098 = vadd.f32 %v1063, %v1097
    %1099 = vmatmul.f32.gmra.mxu0 %v970
    %v1100 = vpop.f32.mrf.mxu0
    %v1101 = vadd.f32 %v1066, %v1100
    %1102 = vdwg.mxu0
    %1103 = vmatpush.xpose.msra.mxu0 0.0
    %1104 = vmatpush.xpose.msra.mxu0 0.0
    %1105 = vmatpush.xpose.msra.mxu0 0.0
    %1106 = vmatpush.xpose.msra.mxu0 0.0
    %1107 = vmatpush.xpose.msra.mxu0 0.0
    %1108 = vmatpush.xpose.msra.mxu0 0.0
    %1109 = vmatpush.xpose.msra.mxu0 0.0
    %1110 = vmatpush.xpose.msra.mxu0 0.0
    %1111 = vmatpush.xpose.msra.mxu0 0.0
    %1112 = vmatpush.xpose.msra.mxu0 0.0
    %1113 = vmatpush.xpose.msra.mxu0 0.0
    %1114 = vmatpush.xpose.msra.mxu0 0.0
    %1115 = vmatpush.xpose.msra.mxu0 0.0
    %1116 = vmatpush.xpose.msra.mxu0 0.0
    %1117 = vmatpush.xpose.msra.mxu0 0.0
    %1118 = vmatpush.xpose.msra.mxu0 %v1003
    %1119 = vmatmul.f32.gmra.mxu0 %v811
    %v1120 = vpop.f32.mrf.mxu0
    %v1121 = vadd.f32 %v1086, %v1120
    %1122 = vmatmul.f32.gmra.mxu0 %v843
    %v1123 = vpop.f32.mrf.mxu0
    %v1124 = vadd.f32 %v1089, %v1123
    %1125 = vmatmul.f32.gmra.mxu0 %v875
    %v1126 = vpop.f32.mrf.mxu0
    %v1127 = vadd.f32 %v1092, %v1126
    %1128 = vmatmul.f32.gmra.mxu0 %v907
    %v1129 = vpop.f32.mrf.mxu0
    %v1130 = vadd.f32 %v1095, %v1129
    %1131 = vmatmul.f32.gmra.mxu0 %v939
    %v1132 = vpop.f32.mrf.mxu0
    %v1133 = vadd.f32 %v1098, %v1132
    %1134 = vmatmul.f32.gmra.mxu0 %v971
    %v1135 = vpop.f32.mrf.mxu0
    %v1136 = vadd.f32 %v1101, %v1135
    %1137 = vdwg.mxu0
    %1138 = vmatpush.xpose.msra.mxu0 0.0
    %1139 = vmatpush.xpose.msra.mxu0 0.0
    %1140 = vmatpush.xpose.msra.mxu0 0.0
    %1141 = vmatpush.xpose.msra.mxu0 0.0
    %1142 = vmatpush.xpose.msra.mxu0 0.0
    %1143 = vmatpush.xpose.msra.mxu0 0.0
    %1144 = vmatpush.xpose.msra.mxu0 0.0
    %1145 = vmatpush.xpose.msra.mxu0 0.0
    %1146 = vmatpush.xpose.msra.mxu0 0.0
    %1147 = vmatpush.xpose.msra.mxu0 0.0
    %1148 = vmatpush.xpose.msra.mxu0 0.0
    %1149 = vmatpush.xpose.msra.mxu0 0.0
    %1150 = vmatpush.xpose.msra.mxu0 0.0
    %1151 = vmatpush.xpose.msra.mxu0 0.0
    %1152 = vmatpush.xpose.msra.mxu0 0.0
    %1153 = vmatpush.xpose.msra.mxu0 %v1004
    %1154 = vmatmul.f32.gmra.mxu0 %v812
    %v1155 = vpop.f32.mrf.mxu0
    %v1156 = vadd.f32 %v1121, %v1155
    %1157 = vmatmul.f32.gmra.mxu0 %v844
    %v1158 = vpop.f32.mrf.mxu0
    %v1159 = vadd.f32 %v1124, %v1158
    %1160 = vmatmul.f32.gmra.mxu0 %v876
    %v1161 = vpop.f32.mrf.mxu0
    %v1162 = vadd.f32 %v1127, %v1161
    %1163 = vmatmul.f32.gmra.mxu0 %v908
    %v1164 = vpop.f32.mrf.mxu0
    %v1165 = vadd.f32 %v1130, %v1164
    %1166 = vmatmul.f32.gmra.mxu0 %v940
    %v1167 = vpop.f32.mrf.mxu0
    %v1168 = vadd.f32 %v1133, %v1167
    %1169 = vmatmul.f32.gmra.mxu0 %v972
    %v1170 = vpop.f32.mrf.mxu0
    %v1171 = vadd.f32 %v1136, %v1170
    %1172 = vdwg.mxu0
    %1173 = vmatpush.xpose.msra.mxu0 0.0
    %1174 = vmatpush.xpose.msra.mxu0 0.0
    %1175 = vmatpush.xpose.msra.mxu0 0.0
    %1176 = vmatpush.xpose.msra.mxu0 0.0
    %1177 = vmatpush.xpose.msra.mxu0 0.0
    %1178 = vmatpush.xpose.msra.mxu0 0.0
    %1179 = vmatpush.xpose.msra.mxu0 0.0
    %1180 = vmatpush.xpose.msra.mxu0 0.0
    %1181 = vmatpush.xpose.msra.mxu0 0.0
    %1182 = vmatpush.xpose.msra.mxu0 0.0
    %1183 = vmatpush.xpose.msra.mxu0 0.0
    %1184 = vmatpush.xpose.msra.mxu0 0.0
    %1185 = vmatpush.xpose.msra.mxu0 0.0
    %1186 = vmatpush.xpose.msra.mxu0 0.0
    %1187 = vmatpush.xpose.msra.mxu0 0.0
    %1188 = vmatpush.xpose.msra.mxu0 %v1005
    %1189 = vmatmul.f32.gmra.mxu0 %v813
    %v1190 = vpop.f32.mrf.mxu0
    %v1191 = vadd.f32 %v1156, %v1190
    %1192 = vmatmul.f32.gmra.mxu0 %v845
    %v1193 = vpop.f32.mrf.mxu0
    %v1194 = vadd.f32 %v1159, %v1193
    %1195 = vmatmul.f32.gmra.mxu0 %v877
    %v1196 = vpop.f32.mrf.mxu0
    %v1197 = vadd.f32 %v1162, %v1196
    %1198 = vmatmul.f32.gmra.mxu0 %v909
    %v1199 = vpop.f32.mrf.mxu0
    %v1200 = vadd.f32 %v1165, %v1199
    %1201 = vmatmul.f32.gmra.mxu0 %v941
    %v1202 = vpop.f32.mrf.mxu0
    %v1203 = vadd.f32 %v1168, %v1202
    %1204 = vmatmul.f32.gmra.mxu0 %v973
    %v1205 = vpop.f32.mrf.mxu0
    %v1206 = vadd.f32 %v1171, %v1205
    %1207 = vdwg.mxu0
    %1208 = vmatpush.xpose.msra.mxu0 0.0
    %1209 = vmatpush.xpose.msra.mxu0 0.0
    %1210 = vmatpush.xpose.msra.mxu0 0.0
    %1211 = vmatpush.xpose.msra.mxu0 0.0
    %1212 = vmatpush.xpose.msra.mxu0 0.0
    %1213 = vmatpush.xpose.msra.mxu0 0.0
    %1214 = vmatpush.xpose.msra.mxu0 0.0
    %1215 = vmatpush.xpose.msra.mxu0 0.0
    %1216 = vmatpush.xpose.msra.mxu0 0.0
    %1217 = vmatpush.xpose.msra.mxu0 0.0
    %1218 = vmatpush.xpose.msra.mxu0 0.0
    %1219 = vmatpush.xpose.msra.mxu0 0.0
    %1220 = vmatpush.xpose.msra.mxu0 0.0
    %1221 = vmatpush.xpose.msra.mxu0 0.0
    %1222 = vmatpush.xpose.msra.mxu0 0.0
    %1223 = vmatpush.xpose.msra.mxu0 %v1006
    %1224 = vmatmul.f32.gmra.mxu0 %v814
    %v1225 = vpop.f32.mrf.mxu0
    %v1226 = vadd.f32 %v1191, %v1225
    %1227 = vmatmul.f32.gmra.mxu0 %v846
    %v1228 = vpop.f32.mrf.mxu0
    %v1229 = vadd.f32 %v1194, %v1228
    %1230 = vmatmul.f32.gmra.mxu0 %v878
    %v1231 = vpop.f32.mrf.mxu0
    %v1232 = vadd.f32 %v1197, %v1231
    %1233 = vmatmul.f32.gmra.mxu0 %v910
    %v1234 = vpop.f32.mrf.mxu0
    %v1235 = vadd.f32 %v1200, %v1234
    %1236 = vmatmul.f32.gmra.mxu0 %v942
    %v1237 = vpop.f32.mrf.mxu0
    %v1238 = vadd.f32 %v1203, %v1237
    %1239 = vmatmul.f32.gmra.mxu0 %v974
    %v1240 = vpop.f32.mrf.mxu0
    %v1241 = vadd.f32 %v1206, %v1240
    %1242 = vdwg.mxu0
    %1243 = vmatpush.xpose.msra.mxu0 0.0
    %1244 = vmatpush.xpose.msra.mxu0 0.0
    %1245 = vmatpush.xpose.msra.mxu0 0.0
    %1246 = vmatpush.xpose.msra.mxu0 0.0
    %1247 = vmatpush.xpose.msra.mxu0 0.0
    %1248 = vmatpush.xpose.msra.mxu0 0.0
    %1249 = vmatpush.xpose.msra.mxu0 0.0
    %1250 = vmatpush.xpose.msra.mxu0 0.0
    %1251 = vmatpush.xpose.msra.mxu0 0.0
    %1252 = vmatpush.xpose.msra.mxu0 0.0
    %1253 = vmatpush.xpose.msra.mxu0 0.0
    %1254 = vmatpush.xpose.msra.mxu0 0.0
    %1255 = vmatpush.xpose.msra.mxu0 0.0
    %1256 = vmatpush.xpose.msra.mxu0 0.0
    %1257 = vmatpush.xpose.msra.mxu0 0.0
    %1258 = vmatpush.xpose.msra.mxu0 %v1007
    %1259 = vmatmul.f32.gmra.mxu0 %v815
    %v1260 = vpop.f32.mrf.mxu0
    %v1261 = vadd.f32 %v1226, %v1260
    %1262 = vmatmul.f32.gmra.mxu0 %v847
    %v1263 = vpop.f32.mrf.mxu0
    %v1264 = vadd.f32 %v1229, %v1263
    %1265 = vmatmul.f32.gmra.mxu0 %v879
    %v1266 = vpop.f32.mrf.mxu0
    %v1267 = vadd.f32 %v1232, %v1266
    %1268 = vmatmul.f32.gmra.mxu0 %v911
    %v1269 = vpop.f32.mrf.mxu0
    %v1270 = vadd.f32 %v1235, %v1269
    %1271 = vmatmul.f32.gmra.mxu0 %v943
    %v1272 = vpop.f32.mrf.mxu0
    %v1273 = vadd.f32 %v1238, %v1272
    %1274 = vmatmul.f32.gmra.mxu0 %v975
    %v1275 = vpop.f32.mrf.mxu0
    %v1276 = vadd.f32 %v1241, %v1275
    %1277 = vdwg.mxu0
    %1278 = vmatpush.xpose.msra.mxu0 0.0
    %1279 = vmatpush.xpose.msra.mxu0 0.0
    %1280 = vmatpush.xpose.msra.mxu0 0.0
    %1281 = vmatpush.xpose.msra.mxu0 0.0
    %1282 = vmatpush.xpose.msra.mxu0 0.0
    %1283 = vmatpush.xpose.msra.mxu0 0.0
    %1284 = vmatpush.xpose.msra.mxu0 0.0
    %1285 = vmatpush.xpose.msra.mxu0 0.0
    %1286 = vmatpush.xpose.msra.mxu0 0.0
    %1287 = vmatpush.xpose.msra.mxu0 0.0
    %1288 = vmatpush.xpose.msra.mxu0 0.0
    %1289 = vmatpush.xpose.msra.mxu0 0.0
    %1290 = vmatpush.xpose.msra.mxu0 0.0
    %1291 = vmatpush.xpose.msra.mxu0 0.0
    %1292 = vmatpush.xpose.msra.mxu0 0.0
    %1293 = vmatpush.xpose.msra.mxu0 %v1008
    %1294 = vmatmul.f32.gmra.mxu0 %v816
    %v1295 = vpop.f32.mrf.mxu0
    %v1296 = vadd.f32 %v1261, %v1295
    %1297 = vmatmul.f32.gmra.mxu0 %v848
    %v1298 = vpop.f32.mrf.mxu0
    %v1299 = vadd.f32 %v1264, %v1298
    %1300 = vmatmul.f32.gmra.mxu0 %v880
    %v1301 = vpop.f32.mrf.mxu0
    %v1302 = vadd.f32 %v1267, %v1301
    %1303 = vmatmul.f32.gmra.mxu0 %v912
    %v1304 = vpop.f32.mrf.mxu0
    %v1305 = vadd.f32 %v1270, %v1304
    %1306 = vmatmul.f32.gmra.mxu0 %v944
    %v1307 = vpop.f32.mrf.mxu0
    %v1308 = vadd.f32 %v1273, %v1307
    %1309 = vmatmul.f32.gmra.mxu0 %v976
    %v1310 = vpop.f32.mrf.mxu0
    %v1311 = vadd.f32 %v1276, %v1310
    %1312 = vdwg.mxu0
    %1313 = vmatpush.xpose.msra.mxu0 0.0
    %1314 = vmatpush.xpose.msra.mxu0 0.0
    %1315 = vmatpush.xpose.msra.mxu0 0.0
    %1316 = vmatpush.xpose.msra.mxu0 0.0
    %1317 = vmatpush.xpose.msra.mxu0 0.0
    %1318 = vmatpush.xpose.msra.mxu0 0.0
    %1319 = vmatpush.xpose.msra.mxu0 0.0
    %1320 = vmatpush.xpose.msra.mxu0 0.0
    %1321 = vmatpush.xpose.msra.mxu0 0.0
    %1322 = vmatpush.xpose.msra.mxu0 0.0
    %1323 = vmatpush.xpose.msra.mxu0 0.0
    %1324 = vmatpush.xpose.msra.mxu0 0.0
    %1325 = vmatpush.xpose.msra.mxu0 0.0
    %1326 = vmatpush.xpose.msra.mxu0 0.0
    %1327 = vmatpush.xpose.msra.mxu0 0.0
    %1328 = vmatpush.xpose.msra.mxu0 %v1009
    %1329 = vmatmul.f32.gmra.mxu0 %v817
    %v1330 = vpop.f32.mrf.mxu0
    %v1331 = vadd.f32 %v1296, %v1330
    %1332 = vmatmul.f32.gmra.mxu0 %v849
    %v1333 = vpop.f32.mrf.mxu0
    %v1334 = vadd.f32 %v1299, %v1333
    %1335 = vmatmul.f32.gmra.mxu0 %v881
    %v1336 = vpop.f32.mrf.mxu0
    %v1337 = vadd.f32 %v1302, %v1336
    %1338 = vmatmul.f32.gmra.mxu0 %v913
    %v1339 = vpop.f32.mrf.mxu0
    %v1340 = vadd.f32 %v1305, %v1339
    %1341 = vmatmul.f32.gmra.mxu0 %v945
    %v1342 = vpop.f32.mrf.mxu0
    %v1343 = vadd.f32 %v1308, %v1342
    %1344 = vmatmul.f32.gmra.mxu0 %v977
    %v1345 = vpop.f32.mrf.mxu0
    %v1346 = vadd.f32 %v1311, %v1345
    %1347 = vdwg.mxu0
    %1348 = vmatpush.xpose.msra.mxu0 0.0
    %1349 = vmatpush.xpose.msra.mxu0 0.0
    %1350 = vmatpush.xpose.msra.mxu0 0.0
    %1351 = vmatpush.xpose.msra.mxu0 0.0
    %1352 = vmatpush.xpose.msra.mxu0 0.0
    %1353 = vmatpush.xpose.msra.mxu0 0.0
    %1354 = vmatpush.xpose.msra.mxu0 0.0
    %1355 = vmatpush.xpose.msra.mxu0 0.0
    %1356 = vmatpush.xpose.msra.mxu0 0.0
    %1357 = vmatpush.xpose.msra.mxu0 0.0
    %1358 = vmatpush.xpose.msra.mxu0 0.0
    %1359 = vmatpush.xpose.msra.mxu0 0.0
    %1360 = vmatpush.xpose.msra.mxu0 0.0
    %1361 = vmatpush.xpose.msra.mxu0 0.0
    %1362 = vmatpush.xpose.msra.mxu0 0.0
    %1363 = vmatpush.xpose.msra.mxu0 %v1010
    %1364 = vmatmul.f32.gmra.mxu0 %v818
    %v1365 = vpop.f32.mrf.mxu0
    %v1366 = vadd.f32 %v1331, %v1365
    %1367 = vmatmul.f32.gmra.mxu0 %v850
    %v1368 = vpop.f32.mrf.mxu0
    %v1369 = vadd.f32 %v1334, %v1368
    %1370 = vmatmul.f32.gmra.mxu0 %v882
    %v1371 = vpop.f32.mrf.mxu0
    %v1372 = vadd.f32 %v1337, %v1371
    %1373 = vmatmul.f32.gmra.mxu0 %v914
    %v1374 = vpop.f32.mrf.mxu0
    %v1375 = vadd.f32 %v1340, %v1374
    %1376 = vmatmul.f32.gmra.mxu0 %v946
    %v1377 = vpop.f32.mrf.mxu0
    %v1378 = vadd.f32 %v1343, %v1377
    %1379 = vmatmul.f32.gmra.mxu0 %v978
    %v1380 = vpop.f32.mrf.mxu0
    %v1381 = vadd.f32 %v1346, %v1380
    %1382 = vdwg.mxu0
    %1383 = vmatpush.xpose.msra.mxu0 0.0
    %1384 = vmatpush.xpose.msra.mxu0 0.0
    %1385 = vmatpush.xpose.msra.mxu0 0.0
    %1386 = vmatpush.xpose.msra.mxu0 0.0
    %1387 = vmatpush.xpose.msra.mxu0 0.0
    %1388 = vmatpush.xpose.msra.mxu0 0.0
    %1389 = vmatpush.xpose.msra.mxu0 0.0
    %1390 = vmatpush.xpose.msra.mxu0 0.0
    %1391 = vmatpush.xpose.msra.mxu0 0.0
    %1392 = vmatpush.xpose.msra.mxu0 0.0
    %1393 = vmatpush.xpose.msra.mxu0 0.0
    %1394 = vmatpush.xpose.msra.mxu0 0.0
    %1395 = vmatpush.xpose.msra.mxu0 0.0
    %1396 = vmatpush.xpose.msra.mxu0 0.0
    %1397 = vmatpush.xpose.msra.mxu0 0.0
    %1398 = vmatpush.xpose.msra.mxu0 %v1011
    %1399 = vmatmul.f32.gmra.mxu0 %v819
    %v1400 = vpop.f32.mrf.mxu0
    %v1401 = vadd.f32 %v1366, %v1400
    %1402 = vmatmul.f32.gmra.mxu0 %v851
    %v1403 = vpop.f32.mrf.mxu0
    %v1404 = vadd.f32 %v1369, %v1403
    %1405 = vmatmul.f32.gmra.mxu0 %v883
    %v1406 = vpop.f32.mrf.mxu0
    %v1407 = vadd.f32 %v1372, %v1406
    %1408 = vmatmul.f32.gmra.mxu0 %v915
    %v1409 = vpop.f32.mrf.mxu0
    %v1410 = vadd.f32 %v1375, %v1409
    %1411 = vmatmul.f32.gmra.mxu0 %v947
    %v1412 = vpop.f32.mrf.mxu0
    %v1413 = vadd.f32 %v1378, %v1412
    %1414 = vmatmul.f32.gmra.mxu0 %v979
    %v1415 = vpop.f32.mrf.mxu0
    %v1416 = vadd.f32 %v1381, %v1415
    %1417 = vdwg.mxu0
    %1418 = vmatpush.xpose.msra.mxu0 0.0
    %1419 = vmatpush.xpose.msra.mxu0 0.0
    %1420 = vmatpush.xpose.msra.mxu0 0.0
    %1421 = vmatpush.xpose.msra.mxu0 0.0
    %1422 = vmatpush.xpose.msra.mxu0 0.0
    %1423 = vmatpush.xpose.msra.mxu0 0.0
    %1424 = vmatpush.xpose.msra.mxu0 0.0
    %1425 = vmatpush.xpose.msra.mxu0 0.0
    %1426 = vmatpush.xpose.msra.mxu0 0.0
    %1427 = vmatpush.xpose.msra.mxu0 0.0
    %1428 = vmatpush.xpose.msra.mxu0 0.0
    %1429 = vmatpush.xpose.msra.mxu0 0.0
    %1430 = vmatpush.xpose.msra.mxu0 0.0
    %1431 = vmatpush.xpose.msra.mxu0 0.0
    %1432 = vmatpush.xpose.msra.mxu0 0.0
    %1433 = vmatpush.xpose.msra.mxu0 %v1012
    %1434 = vmatmul.f32.gmra.mxu0 %v820
    %v1435 = vpop.f32.mrf.mxu0
    %v1436 = vadd.f32 %v1401, %v1435
    %1437 = vmatmul.f32.gmra.mxu0 %v852
    %v1438 = vpop.f32.mrf.mxu0
    %v1439 = vadd.f32 %v1404, %v1438
    %1440 = vmatmul.f32.gmra.mxu0 %v884
    %v1441 = vpop.f32.mrf.mxu0
    %v1442 = vadd.f32 %v1407, %v1441
    %1443 = vmatmul.f32.gmra.mxu0 %v916
    %v1444 = vpop.f32.mrf.mxu0
    %v1445 = vadd.f32 %v1410, %v1444
    %1446 = vmatmul.f32.gmra.mxu0 %v948
    %v1447 = vpop.f32.mrf.mxu0
    %v1448 = vadd.f32 %v1413, %v1447
    %1449 = vmatmul.f32.gmra.mxu0 %v980
    %v1450 = vpop.f32.mrf.mxu0
    %v1451 = vadd.f32 %v1416, %v1450
    %1452 = vdwg.mxu0
    %1453 = vmatpush.xpose.msra.mxu0 0.0
    %1454 = vmatpush.xpose.msra.mxu0 0.0
    %1455 = vmatpush.xpose.msra.mxu0 0.0
    %1456 = vmatpush.xpose.msra.mxu0 0.0
    %1457 = vmatpush.xpose.msra.mxu0 0.0
    %1458 = vmatpush.xpose.msra.mxu0 0.0
    %1459 = vmatpush.xpose.msra.mxu0 0.0
    %1460 = vmatpush.xpose.msra.mxu0 0.0
    %1461 = vmatpush.xpose.msra.mxu0 0.0
    %1462 = vmatpush.xpose.msra.mxu0 0.0
    %1463 = vmatpush.xpose.msra.mxu0 0.0
    %1464 = vmatpush.xpose.msra.mxu0 0.0
    %1465 = vmatpush.xpose.msra.mxu0 0.0
    %1466 = vmatpush.xpose.msra.mxu0 0.0
    %1467 = vmatpush.xpose.msra.mxu0 0.0
    %1468 = vmatpush.xpose.msra.mxu0 %v1013
    %1469 = vmatmul.f32.gmra.mxu0 %v821
    %v1470 = vpop.f32.mrf.mxu0
    %v1471 = vadd.f32 %v1436, %v1470
    %1472 = vmatmul.f32.gmra.mxu0 %v853
    %v1473 = vpop.f32.mrf.mxu0
    %v1474 = vadd.f32 %v1439, %v1473
    %1475 = vmatmul.f32.gmra.mxu0 %v885
    %v1476 = vpop.f32.mrf.mxu0
    %v1477 = vadd.f32 %v1442, %v1476
    %1478 = vmatmul.f32.gmra.mxu0 %v917
    %v1479 = vpop.f32.mrf.mxu0
    %v1480 = vadd.f32 %v1445, %v1479
    %1481 = vmatmul.f32.gmra.mxu0 %v949
    %v1482 = vpop.f32.mrf.mxu0
    %v1483 = vadd.f32 %v1448, %v1482
    %1484 = vmatmul.f32.gmra.mxu0 %v981
    %v1485 = vpop.f32.mrf.mxu0
    %v1486 = vadd.f32 %v1451, %v1485
    %1487 = vdwg.mxu0
    %1488 = vmatpush.xpose.msra.mxu0 0.0
    %1489 = vmatpush.xpose.msra.mxu0 0.0
    %1490 = vmatpush.xpose.msra.mxu0 0.0
    %1491 = vmatpush.xpose.msra.mxu0 0.0
    %1492 = vmatpush.xpose.msra.mxu0 0.0
    %1493 = vmatpush.xpose.msra.mxu0 0.0
    %1494 = vmatpush.xpose.msra.mxu0 0.0
    %1495 = vmatpush.xpose.msra.mxu0 0.0
    %1496 = vmatpush.xpose.msra.mxu0 0.0
    %1497 = vmatpush.xpose.msra.mxu0 0.0
    %1498 = vmatpush.xpose.msra.mxu0 0.0
    %1499 = vmatpush.xpose.msra.mxu0 0.0
    %1500 = vmatpush.xpose.msra.mxu0 0.0
    %1501 = vmatpush.xpose.msra.mxu0 0.0
    %1502 = vmatpush.xpose.msra.mxu0 0.0
    %1503 = vmatpush.xpose.msra.mxu0 %v1014
    %1504 = vmatmul.f32.gmra.mxu0 %v822
    %v1505 = vpop.f32.mrf.mxu0
    %v1506 = vadd.f32 %v1471, %v1505
    %1507 = vmatmul.f32.gmra.mxu0 %v854
    %v1508 = vpop.f32.mrf.mxu0
    %v1509 = vadd.f32 %v1474, %v1508
    %1510 = vmatmul.f32.gmra.mxu0 %v886
    %v1511 = vpop.f32.mrf.mxu0
    %v1512 = vadd.f32 %v1477, %v1511
    %1513 = vmatmul.f32.gmra.mxu0 %v918
    %v1514 = vpop.f32.mrf.mxu0
    %v1515 = vadd.f32 %v1480, %v1514
    %1516 = vmatmul.f32.gmra.mxu0 %v950
    %v1517 = vpop.f32.mrf.mxu0
    %v1518 = vadd.f32 %v1483, %v1517
    %1519 = vmatmul.f32.gmra.mxu0 %v982
    %v1520 = vpop.f32.mrf.mxu0
    %v1521 = vadd.f32 %v1486, %v1520
    %1522 = vdwg.mxu0
    %1523 = vmatpush.xpose.msra.mxu0 0.0
    %1524 = vmatpush.xpose.msra.mxu0 0.0
    %1525 = vmatpush.xpose.msra.mxu0 0.0
    %1526 = vmatpush.xpose.msra.mxu0 0.0
    %1527 = vmatpush.xpose.msra.mxu0 0.0
    %1528 = vmatpush.xpose.msra.mxu0 0.0
    %1529 = vmatpush.xpose.msra.mxu0 0.0
    %1530 = vmatpush.xpose.msra.mxu0 0.0
    %1531 = vmatpush.xpose.msra.mxu0 0.0
    %1532 = vmatpush.xpose.msra.mxu0 0.0
    %1533 = vmatpush.xpose.msra.mxu0 0.0
    %1534 = vmatpush.xpose.msra.mxu0 0.0
    %1535 = vmatpush.xpose.msra.mxu0 0.0
    %1536 = vmatpush.xpose.msra.mxu0 0.0
    %1537 = vmatpush.xpose.msra.mxu0 0.0
    %1538 = vmatpush.xpose.msra.mxu0 %v1015
    %1539 = vmatmul.f32.gmra.mxu0 %v823
    %v1540 = vpop.f32.mrf.mxu0
    %v1541 = vadd.f32 %v1506, %v1540
    %1542 = vmatmul.f32.gmra.mxu0 %v855
    %v1543 = vpop.f32.mrf.mxu0
    %v1544 = vadd.f32 %v1509, %v1543
    %1545 = vmatmul.f32.gmra.mxu0 %v887
    %v1546 = vpop.f32.mrf.mxu0
    %v1547 = vadd.f32 %v1512, %v1546
    %1548 = vmatmul.f32.gmra.mxu0 %v919
    %v1549 = vpop.f32.mrf.mxu0
    %v1550 = vadd.f32 %v1515, %v1549
    %1551 = vmatmul.f32.gmra.mxu0 %v951
    %v1552 = vpop.f32.mrf.mxu0
    %v1553 = vadd.f32 %v1518, %v1552
    %1554 = vmatmul.f32.gmra.mxu0 %v983
    %v1555 = vpop.f32.mrf.mxu0
    %v1556 = vadd.f32 %v1521, %v1555
    %1557 = vdwg.mxu0
    %1558 = vmatpush.xpose.msra.mxu0 0.0
    %1559 = vmatpush.xpose.msra.mxu0 0.0
    %1560 = vmatpush.xpose.msra.mxu0 0.0
    %1561 = vmatpush.xpose.msra.mxu0 0.0
    %1562 = vmatpush.xpose.msra.mxu0 0.0
    %1563 = vmatpush.xpose.msra.mxu0 0.0
    %1564 = vmatpush.xpose.msra.mxu0 0.0
    %1565 = vmatpush.xpose.msra.mxu0 0.0
    %1566 = vmatpush.xpose.msra.mxu0 0.0
    %1567 = vmatpush.xpose.msra.mxu0 0.0
    %1568 = vmatpush.xpose.msra.mxu0 0.0
    %1569 = vmatpush.xpose.msra.mxu0 0.0
    %1570 = vmatpush.xpose.msra.mxu0 0.0
    %1571 = vmatpush.xpose.msra.mxu0 0.0
    %1572 = vmatpush.xpose.msra.mxu0 0.0
    %1573 = vmatpush.xpose.msra.mxu0 %v1016
    %1574 = vmatmul.f32.gmra.mxu0 %v824
    %v1575 = vpop.f32.mrf.mxu0
    %v1576 = vadd.f32 %v1541, %v1575
    %1577 = vmatmul.f32.gmra.mxu0 %v856
    %v1578 = vpop.f32.mrf.mxu0
    %v1579 = vadd.f32 %v1544, %v1578
    %1580 = vmatmul.f32.gmra.mxu0 %v888
    %v1581 = vpop.f32.mrf.mxu0
    %v1582 = vadd.f32 %v1547, %v1581
    %1583 = vmatmul.f32.gmra.mxu0 %v920
    %v1584 = vpop.f32.mrf.mxu0
    %v1585 = vadd.f32 %v1550, %v1584
    %1586 = vmatmul.f32.gmra.mxu0 %v952
    %v1587 = vpop.f32.mrf.mxu0
    %v1588 = vadd.f32 %v1553, %v1587
    %1589 = vmatmul.f32.gmra.mxu0 %v984
    %v1590 = vpop.f32.mrf.mxu0
    %v1591 = vadd.f32 %v1556, %v1590
    %1592 = vdwg.mxu0
    %1593 = vmatpush.xpose.msra.mxu0 0.0
    %1594 = vmatpush.xpose.msra.mxu0 0.0
    %1595 = vmatpush.xpose.msra.mxu0 0.0
    %1596 = vmatpush.xpose.msra.mxu0 0.0
    %1597 = vmatpush.xpose.msra.mxu0 0.0
    %1598 = vmatpush.xpose.msra.mxu0 0.0
    %1599 = vmatpush.xpose.msra.mxu0 0.0
    %1600 = vmatpush.xpose.msra.mxu0 0.0
    %1601 = vmatpush.xpose.msra.mxu0 0.0
    %1602 = vmatpush.xpose.msra.mxu0 0.0
    %1603 = vmatpush.xpose.msra.mxu0 0.0
    %1604 = vmatpush.xpose.msra.mxu0 0.0
    %1605 = vmatpush.xpose.msra.mxu0 0.0
    %1606 = vmatpush.xpose.msra.mxu0 0.0
    %1607 = vmatpush.xpose.msra.mxu0 0.0
    %1608 = vmatpush.xpose.msra.mxu0 %v1017
    %1609 = vmatmul.f32.gmra.mxu0 %v825
    %v1610 = vpop.f32.mrf.mxu0
    %v1611 = vadd.f32 %v1576, %v1610
    %1612 = vmatmul.f32.gmra.mxu0 %v857
    %v1613 = vpop.f32.mrf.mxu0
    %v1614 = vadd.f32 %v1579, %v1613
    %1615 = vmatmul.f32.gmra.mxu0 %v889
    %v1616 = vpop.f32.mrf.mxu0
    %v1617 = vadd.f32 %v1582, %v1616
    %1618 = vmatmul.f32.gmra.mxu0 %v921
    %v1619 = vpop.f32.mrf.mxu0
    %v1620 = vadd.f32 %v1585, %v1619
    %1621 = vmatmul.f32.gmra.mxu0 %v953
    %v1622 = vpop.f32.mrf.mxu0
    %v1623 = vadd.f32 %v1588, %v1622
    %1624 = vmatmul.f32.gmra.mxu0 %v985
    %v1625 = vpop.f32.mrf.mxu0
    %v1626 = vadd.f32 %v1591, %v1625
    %1627 = vdwg.mxu0
    %1628 = vmatpush.xpose.msra.mxu0 0.0
    %1629 = vmatpush.xpose.msra.mxu0 0.0
    %1630 = vmatpush.xpose.msra.mxu0 0.0
    %1631 = vmatpush.xpose.msra.mxu0 0.0
    %1632 = vmatpush.xpose.msra.mxu0 0.0
    %1633 = vmatpush.xpose.msra.mxu0 0.0
    %1634 = vmatpush.xpose.msra.mxu0 0.0
    %1635 = vmatpush.xpose.msra.mxu0 0.0
    %1636 = vmatpush.xpose.msra.mxu0 0.0
    %1637 = vmatpush.xpose.msra.mxu0 0.0
    %1638 = vmatpush.xpose.msra.mxu0 0.0
    %1639 = vmatpush.xpose.msra.mxu0 0.0
    %1640 = vmatpush.xpose.msra.mxu0 0.0
    %1641 = vmatpush.xpose.msra.mxu0 0.0
    %1642 = vmatpush.xpose.msra.mxu0 0.0
    %1643 = vmatpush.xpose.msra.mxu0 %v1018
    %1644 = vmatmul.f32.gmra.mxu0 %v826
    %v1645 = vpop.f32.mrf.mxu0
    %v1646 = vadd.f32 %v1611, %v1645
    %1647 = vmatmul.f32.gmra.mxu0 %v858
    %v1648 = vpop.f32.mrf.mxu0
    %v1649 = vadd.f32 %v1614, %v1648
    %1650 = vmatmul.f32.gmra.mxu0 %v890
    %v1651 = vpop.f32.mrf.mxu0
    %v1652 = vadd.f32 %v1617, %v1651
    %1653 = vmatmul.f32.gmra.mxu0 %v922
    %v1654 = vpop.f32.mrf.mxu0
    %v1655 = vadd.f32 %v1620, %v1654
    %1656 = vmatmul.f32.gmra.mxu0 %v954
    %v1657 = vpop.f32.mrf.mxu0
    %v1658 = vadd.f32 %v1623, %v1657
    %1659 = vmatmul.f32.gmra.mxu0 %v986
    %v1660 = vpop.f32.mrf.mxu0
    %v1661 = vadd.f32 %v1626, %v1660
    %1662 = vdwg.mxu0
    %1663 = vmatpush.xpose.msra.mxu0 0.0
    %1664 = vmatpush.xpose.msra.mxu0 0.0
    %1665 = vmatpush.xpose.msra.mxu0 0.0
    %1666 = vmatpush.xpose.msra.mxu0 0.0
    %1667 = vmatpush.xpose.msra.mxu0 0.0
    %1668 = vmatpush.xpose.msra.mxu0 0.0
    %1669 = vmatpush.xpose.msra.mxu0 0.0
    %1670 = vmatpush.xpose.msra.mxu0 0.0
    %1671 = vmatpush.xpose.msra.mxu0 0.0
    %1672 = vmatpush.xpose.msra.mxu0 0.0
    %1673 = vmatpush.xpose.msra.mxu0 0.0
    %1674 = vmatpush.xpose.msra.mxu0 0.0
    %1675 = vmatpush.xpose.msra.mxu0 0.0
    %1676 = vmatpush.xpose.msra.mxu0 0.0
    %1677 = vmatpush.xpose.msra.mxu0 0.0
    %1678 = vmatpush.xpose.msra.mxu0 %v1019
    %1679 = vmatmul.f32.gmra.mxu0 %v827
    %v1680 = vpop.f32.mrf.mxu0
    %v1681 = vadd.f32 %v1646, %v1680
    %1682 = vmatmul.f32.gmra.mxu0 %v859
    %v1683 = vpop.f32.mrf.mxu0
    %v1684 = vadd.f32 %v1649, %v1683
    %1685 = vmatmul.f32.gmra.mxu0 %v891
    %v1686 = vpop.f32.mrf.mxu0
    %v1687 = vadd.f32 %v1652, %v1686
    %1688 = vmatmul.f32.gmra.mxu0 %v923
    %v1689 = vpop.f32.mrf.mxu0
    %v1690 = vadd.f32 %v1655, %v1689
    %1691 = vmatmul.f32.gmra.mxu0 %v955
    %v1692 = vpop.f32.mrf.mxu0
    %v1693 = vadd.f32 %v1658, %v1692
    %1694 = vmatmul.f32.gmra.mxu0 %v987
    %v1695 = vpop.f32.mrf.mxu0
    %v1696 = vadd.f32 %v1661, %v1695
    %1697 = vdwg.mxu0
    %1698 = vmatpush.xpose.msra.mxu0 0.0
    %1699 = vmatpush.xpose.msra.mxu0 0.0
    %1700 = vmatpush.xpose.msra.mxu0 0.0
    %1701 = vmatpush.xpose.msra.mxu0 0.0
    %1702 = vmatpush.xpose.msra.mxu0 0.0
    %1703 = vmatpush.xpose.msra.mxu0 0.0
    %1704 = vmatpush.xpose.msra.mxu0 0.0
    %1705 = vmatpush.xpose.msra.mxu0 0.0
    %1706 = vmatpush.xpose.msra.mxu0 0.0
    %1707 = vmatpush.xpose.msra.mxu0 0.0
    %1708 = vmatpush.xpose.msra.mxu0 0.0
    %1709 = vmatpush.xpose.msra.mxu0 0.0
    %1710 = vmatpush.xpose.msra.mxu0 0.0
    %1711 = vmatpush.xpose.msra.mxu0 0.0
    %1712 = vmatpush.xpose.msra.mxu0 0.0
    %1713 = vmatpush.xpose.msra.mxu0 %v1020
    %1714 = vmatmul.f32.gmra.mxu0 %v828
    %v1715 = vpop.f32.mrf.mxu0
    %v1716 = vadd.f32 %v1681, %v1715
    %1717 = vmatmul.f32.gmra.mxu0 %v860
    %v1718 = vpop.f32.mrf.mxu0
    %v1719 = vadd.f32 %v1684, %v1718
    %1720 = vmatmul.f32.gmra.mxu0 %v892
    %v1721 = vpop.f32.mrf.mxu0
    %v1722 = vadd.f32 %v1687, %v1721
    %1723 = vmatmul.f32.gmra.mxu0 %v924
    %v1724 = vpop.f32.mrf.mxu0
    %v1725 = vadd.f32 %v1690, %v1724
    %1726 = vmatmul.f32.gmra.mxu0 %v956
    %v1727 = vpop.f32.mrf.mxu0
    %v1728 = vadd.f32 %v1693, %v1727
    %1729 = vmatmul.f32.gmra.mxu0 %v988
    %v1730 = vpop.f32.mrf.mxu0
    %v1731 = vadd.f32 %v1696, %v1730
    %1732 = vdwg.mxu0
    %1733 = vmatpush.xpose.msra.mxu0 0.0
    %1734 = vmatpush.xpose.msra.mxu0 0.0
    %1735 = vmatpush.xpose.msra.mxu0 0.0
    %1736 = vmatpush.xpose.msra.mxu0 0.0
    %1737 = vmatpush.xpose.msra.mxu0 0.0
    %1738 = vmatpush.xpose.msra.mxu0 0.0
    %1739 = vmatpush.xpose.msra.mxu0 0.0
    %1740 = vmatpush.xpose.msra.mxu0 0.0
    %1741 = vmatpush.xpose.msra.mxu0 0.0
    %1742 = vmatpush.xpose.msra.mxu0 0.0
    %1743 = vmatpush.xpose.msra.mxu0 0.0
    %1744 = vmatpush.xpose.msra.mxu0 0.0
    %1745 = vmatpush.xpose.msra.mxu0 0.0
    %1746 = vmatpush.xpose.msra.mxu0 0.0
    %1747 = vmatpush.xpose.msra.mxu0 0.0
    %1748 = vmatpush.xpose.msra.mxu0 %v1021
    %1749 = vmatmul.f32.gmra.mxu0 %v829
    %v1750 = vpop.f32.mrf.mxu0
    %v1751 = vadd.f32 %v1716, %v1750
    %1752 = vmatmul.f32.gmra.mxu0 %v861
    %v1753 = vpop.f32.mrf.mxu0
    %v1754 = vadd.f32 %v1719, %v1753
    %1755 = vmatmul.f32.gmra.mxu0 %v893
    %v1756 = vpop.f32.mrf.mxu0
    %v1757 = vadd.f32 %v1722, %v1756
    %1758 = vmatmul.f32.gmra.mxu0 %v925
    %v1759 = vpop.f32.mrf.mxu0
    %v1760 = vadd.f32 %v1725, %v1759
    %1761 = vmatmul.f32.gmra.mxu0 %v957
    %v1762 = vpop.f32.mrf.mxu0
    %v1763 = vadd.f32 %v1728, %v1762
    %1764 = vmatmul.f32.gmra.mxu0 %v989
    %v1765 = vpop.f32.mrf.mxu0
    %v1766 = vadd.f32 %v1731, %v1765
    %1767 = vdwg.mxu0
    %1768 = vmatpush.xpose.msra.mxu0 0.0
    %1769 = vmatpush.xpose.msra.mxu0 0.0
    %1770 = vmatpush.xpose.msra.mxu0 0.0
    %1771 = vmatpush.xpose.msra.mxu0 0.0
    %1772 = vmatpush.xpose.msra.mxu0 0.0
    %1773 = vmatpush.xpose.msra.mxu0 0.0
    %1774 = vmatpush.xpose.msra.mxu0 0.0
    %1775 = vmatpush.xpose.msra.mxu0 0.0
    %1776 = vmatpush.xpose.msra.mxu0 0.0
    %1777 = vmatpush.xpose.msra.mxu0 0.0
    %1778 = vmatpush.xpose.msra.mxu0 0.0
    %1779 = vmatpush.xpose.msra.mxu0 0.0
    %1780 = vmatpush.xpose.msra.mxu0 0.0
    %1781 = vmatpush.xpose.msra.mxu0 0.0
    %1782 = vmatpush.xpose.msra.mxu0 0.0
    %1783 = vmatpush.xpose.msra.mxu0 %v1022
    %1784 = vmatmul.f32.gmra.mxu0 %v830
    %v1785 = vpop.f32.mrf.mxu0
    %v1786 = vadd.f32 %v1751, %v1785
    %1787 = vmatmul.f32.gmra.mxu0 %v862
    %v1788 = vpop.f32.mrf.mxu0
    %v1789 = vadd.f32 %v1754, %v1788
    %1790 = vmatmul.f32.gmra.mxu0 %v894
    %v1791 = vpop.f32.mrf.mxu0
    %v1792 = vadd.f32 %v1757, %v1791
    %1793 = vmatmul.f32.gmra.mxu0 %v926
    %v1794 = vpop.f32.mrf.mxu0
    %v1795 = vadd.f32 %v1760, %v1794
    %1796 = vmatmul.f32.gmra.mxu0 %v958
    %v1797 = vpop.f32.mrf.mxu0
    %v1798 = vadd.f32 %v1763, %v1797
    %1799 = vmatmul.f32.gmra.mxu0 %v990
    %v1800 = vpop.f32.mrf.mxu0
    %v1801 = vadd.f32 %v1766, %v1800
    %1802 = vdwg.mxu0
    %1803 = vmatpush.xpose.msra.mxu0 0.0
    %1804 = vmatpush.xpose.msra.mxu0 0.0
    %1805 = vmatpush.xpose.msra.mxu0 0.0
    %1806 = vmatpush.xpose.msra.mxu0 0.0
    %1807 = vmatpush.xpose.msra.mxu0 0.0
    %1808 = vmatpush.xpose.msra.mxu0 0.0
    %1809 = vmatpush.xpose.msra.mxu0 0.0
    %1810 = vmatpush.xpose.msra.mxu0 0.0
    %1811 = vmatpush.xpose.msra.mxu0 0.0
    %1812 = vmatpush.xpose.msra.mxu0 0.0
    %1813 = vmatpush.xpose.msra.mxu0 0.0
    %1814 = vmatpush.xpose.msra.mxu0 0.0
    %1815 = vmatpush.xpose.msra.mxu0 0.0
    %1816 = vmatpush.xpose.msra.mxu0 0.0
    %1817 = vmatpush.xpose.msra.mxu0 0.0
    %1818 = vmatpush.xpose.msra.mxu0 %v1023
    %1819 = vmatmul.f32.gmra.mxu0 %v831
    %v1820 = vpop.f32.mrf.mxu0
    %v1821 = vadd.f32 %v1786, %v1820
    %1822 = vmatmul.f32.gmra.mxu0 %v863
    %v1823 = vpop.f32.mrf.mxu0
    %v1824 = vadd.f32 %v1789, %v1823
    %1825 = vmatmul.f32.gmra.mxu0 %v895
    %v1826 = vpop.f32.mrf.mxu0
    %v1827 = vadd.f32 %v1792, %v1826
    %1828 = vmatmul.f32.gmra.mxu0 %v927
    %v1829 = vpop.f32.mrf.mxu0
    %v1830 = vadd.f32 %v1795, %v1829
    %1831 = vmatmul.f32.gmra.mxu0 %v959
    %v1832 = vpop.f32.mrf.mxu0
    %v1833 = vadd.f32 %v1798, %v1832
    %1834 = vmatmul.f32.gmra.mxu0 %v991
    %v1835 = vpop.f32.mrf.mxu0
    %v1836 = vadd.f32 %v1801, %v1835
    %1837 = vdwg.mxu0
    %1838 = vmatpush.xpose.msra.mxu0 0.0
    %1839 = vmatpush.xpose.msra.mxu0 0.0
    %1840 = vmatpush.xpose.msra.mxu0 0.0
    %1841 = vmatpush.xpose.msra.mxu0 0.0
    %1842 = vmatpush.xpose.msra.mxu0 0.0
    %1843 = vmatpush.xpose.msra.mxu0 0.0
    %1844 = vmatpush.xpose.msra.mxu0 0.0
    %1845 = vmatpush.xpose.msra.mxu0 0.0
    %1846 = vmatpush.xpose.msra.mxu0 0.0
    %1847 = vmatpush.xpose.msra.mxu0 0.0
    %1848 = vmatpush.xpose.msra.mxu0 0.0
    %1849 = vmatpush.xpose.msra.mxu0 0.0
    %1850 = vmatpush.xpose.msra.mxu0 0.0
    %1851 = vmatpush.xpose.msra.mxu0 0.0
    %1852 = vmatpush.xpose.msra.mxu0 0.0
    %1853 = vmatpush.xpose.msra.mxu0 %v1024
    %1854 = vmatmul.f32.gmra.mxu0 %v832
    %v1855 = vpop.f32.mrf.mxu0
    %v1856 = vadd.f32 %v1821, %v1855
    %1857 = vmatmul.f32.gmra.mxu0 %v864
    %v1858 = vpop.f32.mrf.mxu0
    %v1859 = vadd.f32 %v1824, %v1858
    %1860 = vmatmul.f32.gmra.mxu0 %v896
    %v1861 = vpop.f32.mrf.mxu0
    %v1862 = vadd.f32 %v1827, %v1861
    %1863 = vmatmul.f32.gmra.mxu0 %v928
    %v1864 = vpop.f32.mrf.mxu0
    %v1865 = vadd.f32 %v1830, %v1864
    %1866 = vmatmul.f32.gmra.mxu0 %v960
    %v1867 = vpop.f32.mrf.mxu0
    %v1868 = vadd.f32 %v1833, %v1867
    %1869 = vmatmul.f32.gmra.mxu0 %v992
    %v1870 = vpop.f32.mrf.mxu0
    %v1871 = vadd.f32 %v1836, %v1870
    %1872 = vdwg.mxu0
    %1873 = vmatpush.xpose.msra.mxu0 0.0
    %1874 = vmatpush.xpose.msra.mxu0 0.0
    %1875 = vmatpush.xpose.msra.mxu0 0.0
    %1876 = vmatpush.xpose.msra.mxu0 0.0
    %1877 = vmatpush.xpose.msra.mxu0 0.0
    %1878 = vmatpush.xpose.msra.mxu0 0.0
    %1879 = vmatpush.xpose.msra.mxu0 0.0
    %1880 = vmatpush.xpose.msra.mxu0 0.0
    %1881 = vmatpush.xpose.msra.mxu0 0.0
    %1882 = vmatpush.xpose.msra.mxu0 0.0
    %1883 = vmatpush.xpose.msra.mxu0 0.0
    %1884 = vmatpush.xpose.msra.mxu0 0.0
    %1885 = vmatpush.xpose.msra.mxu0 0.0
    %1886 = vmatpush.xpose.msra.mxu0 0.0
    %1887 = vmatpush.xpose.msra.mxu0 0.0
    %1888 = vmatpush.xpose.msra.mxu0 %v1025
    %1889 = vmatmul.f32.gmra.mxu0 %v833
    %v1890 = vpop.f32.mrf.mxu0
    %v1891 = vadd.f32 %v1856, %v1890
    %1892 = vmatmul.f32.gmra.mxu0 %v865
    %v1893 = vpop.f32.mrf.mxu0
    %v1894 = vadd.f32 %v1859, %v1893
    %1895 = vmatmul.f32.gmra.mxu0 %v897
    %v1896 = vpop.f32.mrf.mxu0
    %v1897 = vadd.f32 %v1862, %v1896
    %1898 = vmatmul.f32.gmra.mxu0 %v929
    %v1899 = vpop.f32.mrf.mxu0
    %v1900 = vadd.f32 %v1865, %v1899
    %1901 = vmatmul.f32.gmra.mxu0 %v961
    %v1902 = vpop.f32.mrf.mxu0
    %v1903 = vadd.f32 %v1868, %v1902
    %1904 = vmatmul.f32.gmra.mxu0 %v993
    %v1905 = vpop.f32.mrf.mxu0
    %v1906 = vadd.f32 %v1871, %v1905
    %1907 = vdwg.mxu0
    %1908 = vmatpush.xpose.msra.mxu0 0.0
    %1909 = vmatpush.xpose.msra.mxu0 0.0
    %1910 = vmatpush.xpose.msra.mxu0 0.0
    %1911 = vmatpush.xpose.msra.mxu0 0.0
    %1912 = vmatpush.xpose.msra.mxu0 0.0
    %1913 = vmatpush.xpose.msra.mxu0 0.0
    %1914 = vmatpush.xpose.msra.mxu0 0.0
    %1915 = vmatpush.xpose.msra.mxu0 0.0
    %1916 = vmatpush.xpose.msra.mxu0 0.0
    %1917 = vmatpush.xpose.msra.mxu0 0.0
    %1918 = vmatpush.xpose.msra.mxu0 0.0
    %1919 = vmatpush.xpose.msra.mxu0 0.0
    %1920 = vmatpush.xpose.msra.mxu0 0.0
    %1921 = vmatpush.xpose.msra.mxu0 0.0
    %1922 = vmatpush.xpose.msra.mxu0 0.0
    %1923 = vmatpush.xpose.msra.mxu0 %v1026
    %1924 = vmatmul.f32.gmra.mxu0 %v834
    %v1925 = vpop.f32.mrf.mxu0
    %v1926 = vadd.f32 %v1891, %v1925
    %1927 = vmatmul.f32.gmra.mxu0 %v866
    %v1928 = vpop.f32.mrf.mxu0
    %v1929 = vadd.f32 %v1894, %v1928
    %1930 = vmatmul.f32.gmra.mxu0 %v898
    %v1931 = vpop.f32.mrf.mxu0
    %v1932 = vadd.f32 %v1897, %v1931
    %1933 = vmatmul.f32.gmra.mxu0 %v930
    %v1934 = vpop.f32.mrf.mxu0
    %v1935 = vadd.f32 %v1900, %v1934
    %1936 = vmatmul.f32.gmra.mxu0 %v962
    %v1937 = vpop.f32.mrf.mxu0
    %v1938 = vadd.f32 %v1903, %v1937
    %1939 = vmatmul.f32.gmra.mxu0 %v994
    %v1940 = vpop.f32.mrf.mxu0
    %v1941 = vadd.f32 %v1906, %v1940
    %1942 = vdwg.mxu0
    %1943 = vmatpush.xpose.msra.mxu0 0.0
    %1944 = vmatpush.xpose.msra.mxu0 0.0
    %1945 = vmatpush.xpose.msra.mxu0 0.0
    %1946 = vmatpush.xpose.msra.mxu0 0.0
    %1947 = vmatpush.xpose.msra.mxu0 0.0
    %1948 = vmatpush.xpose.msra.mxu0 0.0
    %1949 = vmatpush.xpose.msra.mxu0 0.0
    %1950 = vmatpush.xpose.msra.mxu0 0.0
    %1951 = vmatpush.xpose.msra.mxu0 0.0
    %1952 = vmatpush.xpose.msra.mxu0 0.0
    %1953 = vmatpush.xpose.msra.mxu0 0.0
    %1954 = vmatpush.xpose.msra.mxu0 0.0
    %1955 = vmatpush.xpose.msra.mxu0 0.0
    %1956 = vmatpush.xpose.msra.mxu0 0.0
    %1957 = vmatpush.xpose.msra.mxu0 0.0
    %1958 = vmatpush.xpose.msra.mxu0 %v1027
    %1959 = vmatmul.f32.gmra.mxu0 %v835
    %v1960 = vpop.f32.mrf.mxu0
    %v1961 = vadd.f32 %v1926, %v1960
    %1962 = vmatmul.f32.gmra.mxu0 %v867
    %v1963 = vpop.f32.mrf.mxu0
    %v1964 = vadd.f32 %v1929, %v1963
    %1965 = vmatmul.f32.gmra.mxu0 %v899
    %v1966 = vpop.f32.mrf.mxu0
    %v1967 = vadd.f32 %v1932, %v1966
    %1968 = vmatmul.f32.gmra.mxu0 %v931
    %v1969 = vpop.f32.mrf.mxu0
    %v1970 = vadd.f32 %v1935, %v1969
    %1971 = vmatmul.f32.gmra.mxu0 %v963
    %v1972 = vpop.f32.mrf.mxu0
    %v1973 = vadd.f32 %v1938, %v1972
    %1974 = vmatmul.f32.gmra.mxu0 %v995
    %v1975 = vpop.f32.mrf.mxu0
    %v1976 = vadd.f32 %v1941, %v1975
    %1977 = vdwg.mxu0
    %1978 = vmatpush.xpose.msra.mxu0 0.0
    %1979 = vmatpush.xpose.msra.mxu0 0.0
    %1980 = vmatpush.xpose.msra.mxu0 0.0
    %1981 = vmatpush.xpose.msra.mxu0 0.0
    %1982 = vmatpush.xpose.msra.mxu0 0.0
    %1983 = vmatpush.xpose.msra.mxu0 0.0
    %1984 = vmatpush.xpose.msra.mxu0 0.0
    %1985 = vmatpush.xpose.msra.mxu0 0.0
    %1986 = vmatpush.xpose.msra.mxu0 0.0
    %1987 = vmatpush.xpose.msra.mxu0 0.0
    %1988 = vmatpush.xpose.msra.mxu0 0.0
    %1989 = vmatpush.xpose.msra.mxu0 0.0
    %1990 = vmatpush.xpose.msra.mxu0 0.0
    %1991 = vmatpush.xpose.msra.mxu0 0.0
    %1992 = vmatpush.xpose.msra.mxu0 0.0
    %1993 = vmatpush.xpose.msra.mxu0 %v1028
    %1994 = vmatmul.f32.gmra.mxu0 %v836
    %v1995 = vpop.f32.mrf.mxu0
    %v1996 = vadd.f32 %v1961, %v1995
    %1997 = vmatmul.f32.gmra.mxu0 %v868
    %v1998 = vpop.f32.mrf.mxu0
    %v1999 = vadd.f32 %v1964, %v1998
    %2000 = vmatmul.f32.gmra.mxu0 %v900
    %v2001 = vpop.f32.mrf.mxu0
    %v2002 = vadd.f32 %v1967, %v2001
    %2003 = vmatmul.f32.gmra.mxu0 %v932
    %v2004 = vpop.f32.mrf.mxu0
    %v2005 = vadd.f32 %v1970, %v2004
    %2006 = vmatmul.f32.gmra.mxu0 %v964
    %v2007 = vpop.f32.mrf.mxu0
    %v2008 = vadd.f32 %v1973, %v2007
    %2009 = vmatmul.f32.gmra.mxu0 %v996
    %v2010 = vpop.f32.mrf.mxu0
    %v2011 = vadd.f32 %v1976, %v2010
    %2012 = vdwg.mxu0
    %2013 = vmatpush.xpose.msra.mxu0 0.0
    %2014 = vmatpush.xpose.msra.mxu0 0.0
    %2015 = vmatpush.xpose.msra.mxu0 0.0
    %2016 = vmatpush.xpose.msra.mxu0 0.0
    %2017 = vmatpush.xpose.msra.mxu0 0.0
    %2018 = vmatpush.xpose.msra.mxu0 0.0
    %2019 = vmatpush.xpose.msra.mxu0 0.0
    %2020 = vmatpush.xpose.msra.mxu0 0.0
    %2021 = vmatpush.xpose.msra.mxu0 0.0
    %2022 = vmatpush.xpose.msra.mxu0 0.0
    %2023 = vmatpush.xpose.msra.mxu0 0.0
    %2024 = vmatpush.xpose.msra.mxu0 0.0
    %2025 = vmatpush.xpose.msra.mxu0 0.0
    %2026 = vmatpush.xpose.msra.mxu0 0.0
    %2027 = vmatpush.xpose.msra.mxu0 0.0
    %2028 = vmatpush.xpose.msra.mxu0 %v1029
    %2029 = vmatmul.f32.gmra.mxu0 %v837
    %v2030 = vpop.f32.mrf.mxu0
    %v2031 = vadd.f32 %v1996, %v2030
    %2032 = vmatmul.f32.gmra.mxu0 %v869
    %v2033 = vpop.f32.mrf.mxu0
    %v2034 = vadd.f32 %v1999, %v2033
    %2035 = vmatmul.f32.gmra.mxu0 %v901
    %v2036 = vpop.f32.mrf.mxu0
    %v2037 = vadd.f32 %v2002, %v2036
    %2038 = vmatmul.f32.gmra.mxu0 %v933
    %v2039 = vpop.f32.mrf.mxu0
    %v2040 = vadd.f32 %v2005, %v2039
    %2041 = vmatmul.f32.gmra.mxu0 %v965
    %v2042 = vpop.f32.mrf.mxu0
    %v2043 = vadd.f32 %v2008, %v2042
    %2044 = vmatmul.f32.gmra.mxu0 %v997
    %v2045 = vpop.f32.mrf.mxu0
    %v2046 = vadd.f32 %v2011, %v2045
    %2047 = vdwg.mxu0
    %2048 = vmatpush.xpose.msra.mxu0 0.0
    %2049 = vmatpush.xpose.msra.mxu0 0.0
    %2050 = vmatpush.xpose.msra.mxu0 0.0
    %2051 = vmatpush.xpose.msra.mxu0 0.0
    %2052 = vmatpush.xpose.msra.mxu0 0.0
    %2053 = vmatpush.xpose.msra.mxu0 0.0
    %2054 = vmatpush.xpose.msra.mxu0 0.0
    %2055 = vmatpush.xpose.msra.mxu0 0.0
    %2056 = vmatpush.xpose.msra.mxu0 0.0
    %2057 = vmatpush.xpose.msra.mxu0 0.0
    %2058 = vmatpush.xpose.msra.mxu0 0.0
    %2059 = vmatpush.xpose.msra.mxu0 0.0
    %2060 = vmatpush.xpose.msra.mxu0 0.0
    %2061 = vmatpush.xpose.msra.mxu0 0.0
    %2062 = vmatpush.xpose.msra.mxu0 0.0
    %2063 = vmatpush.xpose.msra.mxu0 %v1030
    %2064 = vmatmul.f32.gmra.mxu0 %v838
    %v2065 = vpop.f32.mrf.mxu0
    %v2066 = vadd.f32 %v2031, %v2065
    %2067 = vmatmul.f32.gmra.mxu0 %v870
    %v2068 = vpop.f32.mrf.mxu0
    %v2069 = vadd.f32 %v2034, %v2068
    %2070 = vmatmul.f32.gmra.mxu0 %v902
    %v2071 = vpop.f32.mrf.mxu0
    %v2072 = vadd.f32 %v2037, %v2071
    %2073 = vmatmul.f32.gmra.mxu0 %v934
    %v2074 = vpop.f32.mrf.mxu0
    %v2075 = vadd.f32 %v2040, %v2074
    %2076 = vmatmul.f32.gmra.mxu0 %v966
    %v2077 = vpop.f32.mrf.mxu0
    %v2078 = vadd.f32 %v2043, %v2077
    %2079 = vmatmul.f32.gmra.mxu0 %v998
    %v2080 = vpop.f32.mrf.mxu0
    %v2081 = vadd.f32 %v2046, %v2080
    %2082 = vdwg.mxu0
    %2083 = vmatpush.xpose.msra.mxu0 0.0
    %2084 = vmatpush.xpose.msra.mxu0 0.0
    %2085 = vmatpush.xpose.msra.mxu0 0.0
    %2086 = vmatpush.xpose.msra.mxu0 0.0
    %2087 = vmatpush.xpose.msra.mxu0 0.0
    %2088 = vmatpush.xpose.msra.mxu0 0.0
    %2089 = vmatpush.xpose.msra.mxu0 0.0
    %2090 = vmatpush.xpose.msra.mxu0 0.0
    %2091 = vmatpush.xpose.msra.mxu0 0.0
    %2092 = vmatpush.xpose.msra.mxu0 0.0
    %2093 = vmatpush.xpose.msra.mxu0 0.0
    %2094 = vmatpush.xpose.msra.mxu0 0.0
    %2095 = vmatpush.xpose.msra.mxu0 0.0
    %2096 = vmatpush.xpose.msra.mxu0 0.0
    %2097 = vmatpush.xpose.msra.mxu0 0.0
    %2098 = vmatpush.xpose.msra.mxu0 %v1031
    %2099 = vmatmul.f32.gmra.mxu0 %v839
    %v2100 = vpop.f32.mrf.mxu0
    %v2101 = vadd.f32 %v2066, %v2100
    %2102 = vmatmul.f32.gmra.mxu0 %v871
    %v2103 = vpop.f32.mrf.mxu0
    %v2104 = vadd.f32 %v2069, %v2103
    %2105 = vmatmul.f32.gmra.mxu0 %v903
    %v2106 = vpop.f32.mrf.mxu0
    %v2107 = vadd.f32 %v2072, %v2106
    %2108 = vmatmul.f32.gmra.mxu0 %v935
    %v2109 = vpop.f32.mrf.mxu0
    %v2110 = vadd.f32 %v2075, %v2109
    %2111 = vmatmul.f32.gmra.mxu0 %v967
    %v2112 = vpop.f32.mrf.mxu0
    %v2113 = vadd.f32 %v2078, %v2112
    %2114 = vmatmul.f32.gmra.mxu0 %v999
    %v2115 = vpop.f32.mrf.mxu0
    %v2116 = vadd.f32 %v2081, %v2115
    %2117 = vdwg.mxu0
    %2118 = vmatpush.xpose.msra.mxu0 0.0
    %2119 = vmatpush.xpose.msra.mxu0 0.0
    %2120 = vmatpush.xpose.msra.mxu0 0.0
    %2121 = vmatpush.xpose.msra.mxu0 0.0
    %2122 = vmatpush.xpose.msra.mxu0 0.0
    %2123 = vmatpush.xpose.msra.mxu0 0.0
    %2124 = vmatpush.xpose.msra.mxu0 0.0
    %2125 = vmatpush.xpose.msra.mxu0 0.0
    %2126 = vmatpush.xpose.msra.mxu0 0.0
    %2127 = vmatpush.xpose.msra.mxu0 0.0
    %2128 = vmatpush.xpose.msra.mxu0 0.0
    %2129 = vmatpush.xpose.msra.mxu0 0.0
    %2130 = vmatpush.xpose.msra.mxu0 0.0
    %2131 = vmatpush.xpose.msra.mxu0 0.0
    %2132 = vmatpush.xpose.msra.mxu0 0.0
    %2133 = vmatpush.xpose.msra.mxu0 %v1032
    %2134 = vmatmul.f32.gmra.mxu0 %v840
    %v2135 = vpop.f32.mrf.mxu0
    %v2136 = vadd.f32 %v2101, %v2135
    %2137 = vmatmul.f32.gmra.mxu0 %v872
    %v2138 = vpop.f32.mrf.mxu0
    %v2139 = vadd.f32 %v2104, %v2138
    %2140 = vmatmul.f32.gmra.mxu0 %v904
    %v2141 = vpop.f32.mrf.mxu0
    %v2142 = vadd.f32 %v2107, %v2141
    %2143 = vmatmul.f32.gmra.mxu0 %v936
    %v2144 = vpop.f32.mrf.mxu0
    %v2145 = vadd.f32 %v2110, %v2144
    %2146 = vmatmul.f32.gmra.mxu0 %v968
    %v2147 = vpop.f32.mrf.mxu0
    %v2148 = vadd.f32 %v2113, %v2147
    %2149 = vmatmul.f32.gmra.mxu0 %v1000
    %v2150 = vpop.f32.mrf.mxu0
    %v2151 = vadd.f32 %v2116, %v2150
    %2152 = vdwg.mxu0
    %vm2153 = vcmask 64512
    %v2154 = vsel %vm2153, %v2136, -inf
    %v2155 = vsel %vm2153, %v2139, -inf
    %v2156 = vmax.f32 %v2154, %v2155
    %v2157 = vrot.slane %v2156, 4
    %v2158 = vmax.f32 %v2156, %v2157
    %v2159 = vrot.slane %v2158, 2
    %v2160 = vmax.f32 %v2158, %v2159
    %v2161 = vrot.slane %v2160, 1
    %v2162 = vmax.f32 %v2160, %v2161
    %v2163 = vsel %vm2153, %v2142, -inf
    %v2164 = vsel %vm2153, %v2145, -inf
    %v2165 = vmax.f32 %v2163, %v2164
    %v2166 = vrot.slane %v2165, 4
    %v2167 = vmax.f32 %v2165, %v2166
    %v2168 = vrot.slane %v2167, 2
    %v2169 = vmax.f32 %v2167, %v2168
    %v2170 = vrot.slane %v2169, 1
    %v2171 = vmax.f32 %v2169, %v2170
    %v2172 = vsel %vm2153, %v2148, -inf
    %v2173 = vsel %vm2153, %v2151, -inf
    %v2174 = vmax.f32 %v2172, %v2173
    %v2175 = vrot.slane %v2174, 4
    %v2176 = vmax.f32 %v2174, %v2175
    %v2177 = vrot.slane %v2176, 2
    %v2178 = vmax.f32 %v2176, %v2177
    %v2179 = vrot.slane %v2178, 1
    %v2180 = vmax.f32 %v2178, %v2179
    %v2181 = vld [vmem:[%s5] sm:$0xff]
    %v2185 = vsel %vm775, %v2171, %v2162
    %v2186 = vsel %vm777, %v2180, %v2185
    %v2187 = vsel %vm2153, %v2186, 0
    %2189 = vmatpush.msra.mxu0 0.0
    %2190 = vmatpush.msra.mxu0 0.0
    %2191 = vmatpush.msra.mxu0 0.0
    %2192 = vmatpush.msra.mxu0 0.0
    %2193 = vmatpush.msra.mxu0 0.0
    %2194 = vmatpush.msra.mxu0 0.0
    %2195 = vmatpush.msra.mxu0 0.0
    %2196 = vmatpush.msra.mxu0 0.0
    %2197 = vmatpush.msra.mxu0 0.0
    %2198 = vmatpush.msra.mxu0 0.0
    %2199 = vmatpush.msra.mxu0 0.0
    %2200 = vmatpush.msra.mxu0 0.0
    %2201 = vmatpush.msra.mxu0 0.0
    %2202 = vmatpush.msra.mxu0 0.0
    %2203 = vmatpush.msra.mxu0 0.0
    %2204 = vmatpush.msra.mxu0 %v2181
    %2205 = vmatmul.f32.gmra.mxu0 %v2187
    %v2206 = vpop.f32.mrf.mxu0
    %v2207 = vadd.f32 0.0, %v2206
    %2208 = vdwg.mxu0
    %v2209 = vadd.f32 %v808, %v2207
    %v2210 = vxor.u32 %v2209, 2147483648
    %v2211 = vmul.f32 %v2210, 1.442695
    %v2212 = vpow.pop %v2211
    %v2213 = vadd.f32 %v2212, 1.0
    %v2214 = vrcp.pop %v2213
    %v2215 = vmul.f32 %v2213, %v2214
    %v2216 = vsub.f32 1.0, %v2215
    %v2217 = vmul.f32 %v2214, %v2216
    %v2218 = vadd.f32 %v2214, %v2217
    %vm2219 = vweird.f32 %v2213
    %vm2220 = vweird.f32 %v2214
    %vm2221 = vmor %vm2219, %vm2220
    %v2222 = vsel %vm2221, %v2214, %v2218
    %v2223 = vand.u32 2147483647, %v2213
    %vm2224 = vcmp.eq.f32.partialorder %v2223, 8.507059e+37
    %v2225 = vand.u32 %v2213, 2147483648
    %v2226 = vor.u32 1.1754944e-38, %v2225
    %v2227 = vsel %vm2224, %v2226, %v2222
    %v2228 = vmul.f32 1.0, %v2227
    %vm2229 = vcmask 59392
    %2230 = vst.msk [vmem:[#allocation2] sm:$0x7] %vm2229, %v2228
    // Predicated region
    $region30: #{device_forward.1} parent=1 // pred_check
      _
    $region31: #{device_forward.1} parent=1 // pred_check_branch
      %2232 = sbr.rel (0) target = $region33
    $region32: #{device_forward.1} parent=1 // pred_region
      %2234 = vsyncadd [#allocation3], 0
      %s2236 = sshll.u32 [#allocation2], 4
      %s2237 = int_to_ptr.vmem [resolvable:$true] %s2236
      %s2238 = sshll.u32 %s7, 4
      %s2239 = int_to_ptr.hbm [resolvable:$true] %s2238
      %2241 = dma.vmem_to_hbm [thread:$0]  %s2237, 64, %s2239, [#allocation3]
    $region33: #{device_forward.1} parent=1 // pred_fallthru
      _
    // Predicated region
    $region34: #{device_forward.1} parent=1 // pred_check
      _
    $region35: #{device_forward.1} parent=1 // pred_check_branch
      %2243 = sbr.rel (0) target = $region37
    $region36: #{device_forward.1} parent=1 // pred_region
      %2245 = dma.done [#allocation3], 64
    $region37: #{device_forward.1} parent=1 // pred_fallthru
      _
    %2246 = vsyncpa [#allocation3], 1

</llo_original>
